<compile_context>
chip_gen: v7x
topology: tpu7x:2x2x1
jax: 0.10.0
libtpu: 0.0.40
codegen_flags: <defaults>
</compile_context>

<pallas_src>
import jax
import jax.numpy as jnp
from jax import lax
from jax.experimental import pallas as pl
from jax.experimental.pallas import tpu as pltpu


def _critic_kernel(x_ref,
                   w1_ref, b1_ref,
                   w2_ref, b2_ref,
                   w3_ref, b3_ref,
                   w4r_ref, b4_ref,
                   o_ref):
    # Layers 1-3: bf16 operands on the MXU, f32 accumulation, f32 bias+ReLU (VPU).
    x = x_ref[...].astype(jnp.bfloat16)                       # (block_b, D)

    h = jnp.dot(x, w1_ref[...], preferred_element_type=jnp.float32) + b1_ref[...]
    h = jnp.maximum(h, 0.0)

    h = jnp.dot(h.astype(jnp.bfloat16), w2_ref[...],
                preferred_element_type=jnp.float32) + b2_ref[...]
    h = jnp.maximum(h, 0.0)

    h = jnp.dot(h.astype(jnp.bfloat16), w3_ref[...],
                preferred_element_type=jnp.float32) + b3_ref[...]
    h = jnp.maximum(h, 0.0)                                   # (block_b, 128) f32

    # Layer 4 (128 -> 1): contract h's feature dim against the w4 row so the
    # batch dim lands on the lane axis -> one lane-dense (1, block_b) store
    # (no masked vst.msk, no 128x broadcast writeback). f32 operands (final).
    out_row = lax.dot_general(
        w4r_ref[...], h, (((1,), (1,)), ((), ())),
        preferred_element_type=jnp.float32) + b4_ref[...]     # (1, block_b)
    o_ref[...] = out_row.reshape(o_ref.shape).astype(o_ref.dtype)


def _choose_block_b(batch, max_block=1024):
    """Batch tile: as large as possible (amortize per-step overhead, keep the
    MXU saturated) while still yielding >= 2 grid programs so the 'parallel'
    grid axis can shard across v7x's two TensorCores."""
    half = -(-batch // 2)            # cdiv(batch, 2)
    tile = -(-half // 128) * 128     # round up to a sublane/lane-friendly 128
    return int(min(max(tile, 128), max_block))


def _mlp_jnp(x, prepared):
    """Plain-JAX path (tiny-batch fallback), numerically matching the kernel."""
    w1, b1, w2, b2, w3, b3, w4r, b4 = prepared
    h = jnp.maximum(x @ w1.astype(jnp.float32) + b1, 0.0)
    h = jnp.maximum(h @ w2.astype(jnp.float32) + b2, 0.0)
    h = jnp.maximum(h @ w3.astype(jnp.float32) + b3, 0.0)
    return h @ w4r.astype(jnp.float32).T + b4


def critic_reference(x, params):
    """Pure-JAX f32 reference of the PyTorch module."""
    h = x
    for i, (w, b) in enumerate(params):
        h = h @ w + b.reshape(1, -1)
        if i < 3:
            h = jnp.maximum(h, 0.0)
    return h


def prepare_params(params):
    """One-time, per-model weight prep (hoisted out of the forward pass):
    bf16 matmul weights for layers 1-3, f32 biases, layer-4 weight as a
    (1, 128) f32 row and its bias as (1, 1)."""
    (w1, b1), (w2, b2), (w3, b3), (w4, b4) = params
    return (
        w1.astype(jnp.bfloat16), b1.reshape(1, -1).astype(jnp.float32),
        w2.astype(jnp.bfloat16), b2.reshape(1, -1).astype(jnp.float32),
        w3.astype(jnp.bfloat16), b3.reshape(1, -1).astype(jnp.float32),
        w4.reshape(1, -1).astype(jnp.float32),
        b4.reshape(1, 1).astype(jnp.float32),
    )


def critic_forward(x, prepared, *, max_block_b=1024, min_pallas_batch=128):
    """Critic MLP forward. x: (B, input_dim) f32 -> (B, 1) f32."""
    w1, b1, w2, b2, w3, b3, w4r, b4 = prepared
    B, D = x.shape
    assert w1.shape[0] == D, (w1.shape, D)

    # Tiny batches are pure launch/DMA latency; skip the kernel.
    if B < min_pallas_batch:
        return _mlp_jnp(x, prepared)

    block_b = _choose_block_b(B, max_block_b)
    num_tiles = pl.cdiv(B, block_b)

    def full(arr):
        # Full-array block + constant index map -> stays VMEM-resident across
        # the grid (the pipeliner elides re-DMA when the block index does not
        # change); only x and the output are (double-)buffered per step.
        return pl.BlockSpec(arr.shape, lambda i, _n=arr.ndim: (0,) * _n)

    flops = 2 * B * (D * 512 + 512 * 256 + 256 * 128 + 128)
    bytes_accessed = int(
        x.size * 4
        + (w1.size + w2.size + w3.size) * 2 + w4r.size * 4
        + (b1.size + b2.size + b3.size + b4.size) * 4
        + num_tiles * block_b * 4)
    cost = pl.CostEstimate(flops=int(flops), transcendentals=0,
                           bytes_accessed=bytes_accessed)

    out3 = pl.pallas_call(
        _critic_kernel,
        out_shape=jax.ShapeDtypeStruct((num_tiles, 1, block_b), jnp.float32),
        grid_spec=pltpu.PrefetchScalarGridSpec(
            num_scalar_prefetch=0,
            grid=(num_tiles,),
            in_specs=[
                pl.BlockSpec((block_b, D), lambda i: (i, 0)),   # x batch tile
                full(w1), full(b1),
                full(w2), full(b2),
                full(w3), full(b3),
                full(w4r), full(b4),
            ],
            out_specs=pl.BlockSpec((1, 1, block_b), lambda i: (i, 0, 0)),
        ),
        compiler_params=pltpu.CompilerParams(
            dimension_semantics=("parallel",),
            vmem_limit_bytes=32 * 1024 * 1024),
        cost_estimate=cost,
    )(x, w1, b1, w2, b2, w3, b3, w4r, b4)

    # Rows of the last (possibly partial) tile beyond B are computed on padded
    # data and dropped here; rows are independent (no cross-row reduction), so
    # this is safe.
    return out3.reshape(-1)[:B].reshape(B, 1)


def init_params(key, input_dim):
    """Deterministic init matching PyTorch Linear defaults. Weights (in, out)."""
    dims = [input_dim, 512, 256, 128, 1]
    params = []
    for i in range(4):
        key, kw, kb = jax.random.split(key, 3)
        bound = 1.0 / jnp.sqrt(dims[i])
        w = jax.random.uniform(kw, (dims[i], dims[i + 1]),
                               minval=-bound, maxval=bound, dtype=jnp.float32)
        b = jax.random.uniform(kb, (1, dims[i + 1]),
                               minval=-bound, maxval=bound, dtype=jnp.float32)
        params.append((w, b))
    return params


if __name__ == "__main__":
    key = jax.random.PRNGKey(0)
    input_dim = 32
    batch = 256   # -> block_b=128, 2 grid programs (both v7x TCs get work)

    kx, kp = jax.random.split(key)
    x = jax.random.normal(kx, (batch, input_dim), dtype=jnp.float32)
    params = init_params(kp, input_dim)
    prepared = prepare_params(params)       # one-time weight prep (cached)

    out = critic_forward(x, prepared)
    out = jax.block_until_ready(out)

    ref = critic_reference(x, params)
    assert out.shape == (batch, 1), out.shape
    # bf16 matmul operands for layers 1-3 (f32 accumulation) -> relaxed tolerance.
    assert jnp.allclose(out, ref, atol=5e-2, rtol=5e-2), (
        f"max abs err {jnp.max(jnp.abs(out - ref))}")

    print("KERNEL_OK")
</pallas_src>

<mosaic_0001>
module attributes {stable_mosaic.version = 11 : i64} {
  func.func @_critic_kernel(%arg0: i32, %arg1: memref<128x32xf32, #tpu.memory_space<vmem>>, %arg2: memref<32x512xbf16, #tpu.memory_space<vmem>>, %arg3: memref<1x512xf32, #tpu.memory_space<vmem>>, %arg4: memref<512x256xbf16, #tpu.memory_space<vmem>>, %arg5: memref<1x256xf32, #tpu.memory_space<vmem>>, %arg6: memref<256x128xbf16, #tpu.memory_space<vmem>>, %arg7: memref<1x128xf32, #tpu.memory_space<vmem>>, %arg8: memref<1x128xf32, #tpu.memory_space<vmem>>, %arg9: memref<1x1xf32, #tpu.memory_space<vmem>>, %arg10: memref<1x1x128xf32, #tpu.memory_space<vmem>>) attributes {dimension_semantics = [#tpu.dimension_semantics<parallel>], iteration_bounds = array<i64: 2>, scalar_prefetch = 0 : i64, scratch_operands = 0 : i64, tpu.core_type = #tpu.core_type<tc>, window_params = [{transform_indices = @transform_0, window_bounds = array<i64: 128, 32>}, {pipeline_mode = #tpu.pipeline_mode<synchronous>, transform_indices = @transform_1, window_bounds = array<i64: 32, 512>}, {pipeline_mode = #tpu.pipeline_mode<synchronous>, transform_indices = @transform_2, window_bounds = array<i64: 1, 512>}, {pipeline_mode = #tpu.pipeline_mode<synchronous>, transform_indices = @transform_3, window_bounds = array<i64: 512, 256>}, {pipeline_mode = #tpu.pipeline_mode<synchronous>, transform_indices = @transform_4, window_bounds = array<i64: 1, 256>}, {pipeline_mode = #tpu.pipeline_mode<synchronous>, transform_indices = @transform_5, window_bounds = array<i64: 256, 128>}, {pipeline_mode = #tpu.pipeline_mode<synchronous>, transform_indices = @transform_6, window_bounds = array<i64: 1, 128>}, {pipeline_mode = #tpu.pipeline_mode<synchronous>, transform_indices = @transform_7, window_bounds = array<i64: 1, 128>}, {pipeline_mode = #tpu.pipeline_mode<synchronous>, transform_indices = @transform_8, window_bounds = array<i64: 1, 1>}, {transform_indices = @transform_9, window_bounds = array<i64: 1, 1, 128>}]} {
    %c0 = arith.constant 0 : index
    %c0_0 = arith.constant 0 : index
    %0 = vector.load %arg1[%c0, %c0_0] : memref<128x32xf32, #tpu.memory_space<vmem>>, vector<128x32xf32>
    %1 = arith.truncf %0 : vector<128x32xf32> to vector<128x32xbf16>
    %c0_1 = arith.constant 0 : index
    %c0_2 = arith.constant 0 : index
    %2 = vector.load %arg2[%c0_1, %c0_2] : memref<32x512xbf16, #tpu.memory_space<vmem>>, vector<32x512xbf16>
    %cst = arith.constant dense<0.000000e+00> : vector<128x512xf32>
    %3 = tpu.matmul %1, %2, %cst {dimension_numbers = #tpu.dot_dimension_numbers<[1], [0], [0], [1], [0, 0, 1, 1], [], []>} : vector<128x32xbf16>, vector<32x512xbf16>, vector<128x512xf32> -> vector<128x512xf32>
    %c0_3 = arith.constant 0 : index
    %c0_4 = arith.constant 0 : index
    %4 = vector.load %arg3[%c0_3, %c0_4] : memref<1x512xf32, #tpu.memory_space<vmem>>, vector<1x512xf32>
    %5 = vector.broadcast %4 : vector<1x512xf32> to vector<128x512xf32>
    %6 = arith.addf %3, %5 : vector<128x512xf32>
    %cst_5 = arith.constant 0.000000e+00 : f32
    %7 = vector.broadcast %cst_5 : f32 to vector<128x512xf32>
    %8 = arith.maximumf %6, %7 : vector<128x512xf32>
    %9 = arith.truncf %8 : vector<128x512xf32> to vector<128x512xbf16>
    %c0_6 = arith.constant 0 : index
    %c0_7 = arith.constant 0 : index
    %10 = vector.load %arg4[%c0_6, %c0_7] : memref<512x256xbf16, #tpu.memory_space<vmem>>, vector<512x256xbf16>
    %cst_8 = arith.constant dense<0.000000e+00> : vector<128x256xf32>
    %11 = tpu.matmul %9, %10, %cst_8 {dimension_numbers = #tpu.dot_dimension_numbers<[1], [0], [0], [1], [0, 0, 1, 1], [], []>} : vector<128x512xbf16>, vector<512x256xbf16>, vector<128x256xf32> -> vector<128x256xf32>
    %c0_9 = arith.constant 0 : index
    %c0_10 = arith.constant 0 : index
    %12 = vector.load %arg5[%c0_9, %c0_10] : memref<1x256xf32, #tpu.memory_space<vmem>>, vector<1x256xf32>
    %13 = vector.broadcast %12 : vector<1x256xf32> to vector<128x256xf32>
    %14 = arith.addf %11, %13 : vector<128x256xf32>
    %cst_11 = arith.constant 0.000000e+00 : f32
    %15 = vector.broadcast %cst_11 : f32 to vector<128x256xf32>
    %16 = arith.maximumf %14, %15 : vector<128x256xf32>
    %17 = arith.truncf %16 : vector<128x256xf32> to vector<128x256xbf16>
    %c0_12 = arith.constant 0 : index
    %c0_13 = arith.constant 0 : index
    %18 = vector.load %arg6[%c0_12, %c0_13] : memref<256x128xbf16, #tpu.memory_space<vmem>>, vector<256x128xbf16>
    %cst_14 = arith.constant dense<0.000000e+00> : vector<128x128xf32>
    %19 = tpu.matmul %17, %18, %cst_14 {dimension_numbers = #tpu.dot_dimension_numbers<[1], [0], [0], [1], [0, 0, 1, 1], [], []>} : vector<128x256xbf16>, vector<256x128xbf16>, vector<128x128xf32> -> vector<128x128xf32>
    %c0_15 = arith.constant 0 : index
    %c0_16 = arith.constant 0 : index
    %20 = vector.load %arg7[%c0_15, %c0_16] : memref<1x128xf32, #tpu.memory_space<vmem>>, vector<1x128xf32>
    %21 = vector.broadcast %20 : vector<1x128xf32> to vector<128x128xf32>
    %22 = arith.addf %19, %21 : vector<128x128xf32>
    %cst_17 = arith.constant 0.000000e+00 : f32
    %23 = vector.broadcast %cst_17 : f32 to vector<128x128xf32>
    %24 = arith.maximumf %22, %23 : vector<128x128xf32>
    %c0_18 = arith.constant 0 : index
    %c0_19 = arith.constant 0 : index
    %25 = vector.load %arg8[%c0_18, %c0_19] : memref<1x128xf32, #tpu.memory_space<vmem>>, vector<1x128xf32>
    %cst_20 = arith.constant dense<0.000000e+00> : vector<1x128xf32>
    %26 = tpu.matmul %25, %24, %cst_20 {dimension_numbers = #tpu.dot_dimension_numbers<[1], [1], [0], [0], [0, 0, 1, 0], [], []>} : vector<1x128xf32>, vector<128x128xf32>, vector<1x128xf32> -> vector<1x128xf32>
    %c0_21 = arith.constant 0 : index
    %c0_22 = arith.constant 0 : index
    %27 = vector.load %arg9[%c0_21, %c0_22] : memref<1x1xf32, #tpu.memory_space<vmem>>, vector<1x1xf32>
    %28 = vector.broadcast %27 : vector<1x1xf32> to vector<1x128xf32>
    %29 = arith.addf %26, %28 : vector<1x128xf32>
    %30 = vector.shape_cast %29 : vector<1x128xf32> to vector<1x1x128xf32>
    %c0_23 = arith.constant 0 : index
    %c0_24 = arith.constant 0 : index
    %c0_25 = arith.constant 0 : index
    %31 = vector.load %arg10[%c0_23, %c0_24, %c0_25] : memref<1x1x128xf32, #tpu.memory_space<vmem>>, vector<1x1x128xf32>
    tpu.vector_store %arg10[%c0_23, %c0_24, %c0_25], %30 {strides = array<i32>} : memref<1x1x128xf32, #tpu.memory_space<vmem>>, vector<1x1x128xf32>,
    return
  }
  func.func @transform_0(%arg0: i32) -> (i32, i32) {
    %c0_i32 = arith.constant 0 : i32
    %c0_i32_0 = arith.constant 0 : i32
    return %arg0, %c0_i32 : i32, i32
  }
  func.func @transform_1(%arg0: i32) -> (i32, i32) {
    %c0_i32 = arith.constant 0 : i32
    %c0_i32_0 = arith.constant 0 : i32
    %c0_i32_1 = arith.constant 0 : i32
    return %c0_i32, %c0_i32_0 : i32, i32
  }
  func.func @transform_2(%arg0: i32) -> (i32, i32) {
    %c0_i32 = arith.constant 0 : i32
    %c0_i32_0 = arith.constant 0 : i32
    %c0_i32_1 = arith.constant 0 : i32
    return %c0_i32, %c0_i32_0 : i32, i32
  }
  func.func @transform_3(%arg0: i32) -> (i32, i32) {
    %c0_i32 = arith.constant 0 : i32
    %c0_i32_0 = arith.constant 0 : i32
    %c0_i32_1 = arith.constant 0 : i32
    return %c0_i32, %c0_i32_0 : i32, i32
  }
  func.func @transform_4(%arg0: i32) -> (i32, i32) {
    %c0_i32 = arith.constant 0 : i32
    %c0_i32_0 = arith.constant 0 : i32
    %c0_i32_1 = arith.constant 0 : i32
    return %c0_i32, %c0_i32_0 : i32, i32
  }
  func.func @transform_5(%arg0: i32) -> (i32, i32) {
    %c0_i32 = arith.constant 0 : i32
    %c0_i32_0 = arith.constant 0 : i32
    %c0_i32_1 = arith.constant 0 : i32
    return %c0_i32, %c0_i32_0 : i32, i32
  }
  func.func @transform_6(%arg0: i32) -> (i32, i32) {
    %c0_i32 = arith.constant 0 : i32
    %c0_i32_0 = arith.constant 0 : i32
    %c0_i32_1 = arith.constant 0 : i32
    return %c0_i32, %c0_i32_0 : i32, i32
  }
  func.func @transform_7(%arg0: i32) -> (i32, i32) {
    %c0_i32 = arith.constant 0 : i32
    %c0_i32_0 = arith.constant 0 : i32
    %c0_i32_1 = arith.constant 0 : i32
    return %c0_i32, %c0_i32_0 : i32, i32
  }
  func.func @transform_8(%arg0: i32) -> (i32, i32) {
    %c0_i32 = arith.constant 0 : i32
    %c0_i32_0 = arith.constant 0 : i32
    %c0_i32_1 = arith.constant 0 : i32
    return %c0_i32, %c0_i32_0 : i32, i32
  }
  func.func @transform_9(%arg0: i32) -> (i32, i32, i32) {
    %c0_i32 = arith.constant 0 : i32
    %c0_i32_0 = arith.constant 0 : i32
    %c0_i32_1 = arith.constant 0 : i32
    return %arg0, %c0_i32, %c0_i32_0 : i32, i32, i32
  }
}

</mosaic_0001>

<llo_original>
// kernel: tpu_custom_call.1
$region0: #{tpu_custom_call.1}
  #allocation0 [shape = 'u32[]', space=smem, size = 0x4, offset = 0x4, fixed_abs, tag = 'smem constant byte address 0x4 - core index']
  #allocation1 [shape = 'u32[144,128]{1,0:T(1,128)}', space=vmem, size = 0x12000, scoped, tag = 'internal scratch']
  #allocation2 [shape = 'f32[1,1]{1,0:T(1,128)S(1)}', space=vmem, size = 0x200, scoped, tag = 'scoped memory for tpu_custom_call.1']
  %s0 = inlined_call_operand.vmem [shape: f32[256,32], index: 0, kind: input, shape index: {}]
  %s1 = inlined_call_operand.vmem [shape: bf16[32,512], index: 1, kind: input, shape index: {}]
  %s2 = inlined_call_operand.vmem [shape: f32[1,512], index: 2, kind: input, shape index: {}]
  %s3 = inlined_call_operand.hbm [shape: bf16[512,256], index: 3, kind: input, shape index: {}]
  %s4 = inlined_call_operand.vmem [shape: f32[1,256], index: 4, kind: input, shape index: {}]
  %s5 = inlined_call_operand.vmem [shape: bf16[256,128], index: 5, kind: input, shape index: {}]
  %s6 = inlined_call_operand.vmem [shape: f32[1,128], index: 6, kind: input, shape index: {}]
  %s7 = inlined_call_operand.vmem [shape: f32[1,128], index: 7, kind: input, shape index: {}]
  %s8 = inlined_call_operand.<no memory space> [shape: f32[1,1], index: 8, kind: input, shape index: {}]
  %s9 = inlined_call_operand.hbm [shape: f32[2,1,128], index: 9, kind: output, shape index: {}]
  %s10 = sld [smem:[#allocation0]]
  $region73: #{tpu_custom_call.1} parent=0
    _
  %s12 = ssub.s32 1, %s10
  %s13 = scalar_select 0, %s12, %s10
  %v14 = vstv %s8
  %15 = vst [vmem:[#allocation2] sm:$0x1] %v14
  $region1: #{tpu_custom_call.1} parent=0
    #allocation3 [shape = 'u8[262144]{0}', space=vmem, size = 0x40000, scoped, tag = 'input window, operand 3, single buffered']
    #allocation4 [shape = 's32[2]{0}', space=sflag, size = 0x8, scoped, tag = 'scoped memory for tpu_custom_call.1']
    #allocation5 [shape = 's32[2]{0}', space=sflag, size = 0x8, scoped, tag = 'scoped memory for tpu_custom_call.1']
    #allocation6 [shape = 'u8[1024]{0}', space=vmem, size = 0x400, scoped, tag = 'output window, operand 0']
    %16 = vsyncpa [#allocation4], 0
    %17 = vsyncpa [#allocation5], 0
    %s18 = scalar_lea.sflag [#allocation5], 1
    %19 = vsyncpa %s18, 0
    loop: start=0, step=1, limit=4
    $region2: #{tpu_custom_call.1} parent=1 // loop_pre_header
      _
    $region3: #{tpu_custom_call.1} parent=1 // loop_header
      %s21 = sphi 0, %s25
      %p22 = scmp.ge.s32.totalorder %s21, 4
      %s31 = sphi 0, %s33
      %s34 = sphi 0, %s31
      %s35 = sphi 0, %s34
      %s51 = sphi 0, %s35
      %s55 = sphi 0, %s55
      %s57 = sphi 0, %s55
      %s58 = sphi 0, %s57
      %s72 = sphi 0, %s58
      %s76 = sphi 0, %s76
      %s78 = sphi 0, %s76
      %s79 = sphi 0, %s78
      %s93 = sphi 0, %s79
      %s97 = sphi 0, %s97
      %s99 = sphi 0, %s97
      %s100 = sphi 0, %s99
      %s114 = sphi 0, %s100
      %s118 = sphi 0, %s118
      %s120 = sphi 0, %s118
      %s121 = sphi 0, %s120
      %s135 = sphi 0, %s121
      %s139 = sphi 0, %s139
      %s141 = sphi 0, %s139
      %s142 = sphi 0, %s141
      %s156 = sphi 0, %s142
      %s160 = sphi 0, %s160
      %s162 = sphi 0, %s160
      %s163 = sphi 0, %s162
      %s177 = sphi 0, %s163
      %s181 = sphi 0, %s181
      %s183 = sphi 0, %s181
      %s184 = sphi 0, %s183
      %s198 = sphi 0, %s184
      %s202 = sphi 0, %s202
      %s204 = sphi 0, %s202
      %s205 = sphi 0, %s204
      %s219 = sphi 0, %s205
      %s225 = sphi 0, %s227
      %s228 = sphi 0, %s225
      %s229 = sphi 0, %s228
      %s245 = sphi 0, %s229
    $region4: #{tpu_custom_call.1} parent=1 // loop_header_branch
      %24 = sbr.rel (%p22) target = $region8
    $region5: #{tpu_custom_call.1} parent=1 // loop_body
      %s26 = ssub.s32 %s21, 1
      %s27 = ssub.s32 %s21, 2
      %s28 = sadd.s32 %s21, 1
      %s29 = ssub.s32 %s21, %s28
      %p30 = scmp.eq.s32.totalorder %s29, 0
      %s32 = sadd.s32 %s31, 1
      %s33 = scalar_select %p30, %s31, %s32
      %p36 = pneg %p30
      %p37 = scmp.eq.s32.totalorder %s21, 1
      %p38 = por %p36, %p37
      %p39 = scmp.ne.s32.totalorder %s31, %s34
      %p40 = scmp.eq.s32.totalorder %s21, 0
      %p41 = por %p39, %p40
      %p42 = scmp.ne.s32.totalorder %s31, %s34
      %p43 = scmp.eq.s32.totalorder %s26, 1
      %p44 = por %p42, %p43
      %p45 = scmp.ne.s32.totalorder %s34, %s35
      %p46 = scmp.eq.s32.totalorder %s26, 0
      %p47 = por %p45, %p46
      %p48 = scmp.ne.s32.totalorder %s34, %s35
      %p49 = scmp.eq.s32.totalorder %s27, 1
      %p50 = por %p48, %p49
      %p52 = scmp.ne.s32.totalorder %s35, %s51
      %p53 = scmp.eq.s32.totalorder %s27, 0
      %p54 = por %p52, %p53
      %s56 = sadd.s32 %s55, 1
      %p59 = scmp.eq.s32.totalorder %s21, 1
      %p60 = scmp.ne.s32.totalorder %s55, %s57
      %p61 = scmp.eq.s32.totalorder %s21, 0
      %p62 = por %p60, %p61
      %p63 = scmp.ne.s32.totalorder %s55, %s57
      %p64 = scmp.eq.s32.totalorder %s26, 1
      %p65 = por %p63, %p64
      %p66 = scmp.ne.s32.totalorder %s57, %s58
      %p67 = scmp.eq.s32.totalorder %s26, 0
      %p68 = por %p66, %p67
      %p69 = scmp.ne.s32.totalorder %s57, %s58
      %p70 = scmp.eq.s32.totalorder %s27, 1
      %p71 = por %p69, %p70
      %p73 = scmp.ne.s32.totalorder %s58, %s72
      %p74 = scmp.eq.s32.totalorder %s27, 0
      %p75 = por %p73, %p74
      %s77 = sadd.s32 %s76, 1
      %p80 = scmp.eq.s32.totalorder %s21, 1
      %p81 = scmp.ne.s32.totalorder %s76, %s78
      %p82 = scmp.eq.s32.totalorder %s21, 0
      %p83 = por %p81, %p82
      %p84 = scmp.ne.s32.totalorder %s76, %s78
      %p85 = scmp.eq.s32.totalorder %s26, 1
      %p86 = por %p84, %p85
      %p87 = scmp.ne.s32.totalorder %s78, %s79
      %p88 = scmp.eq.s32.totalorder %s26, 0
      %p89 = por %p87, %p88
      %p90 = scmp.ne.s32.totalorder %s78, %s79
      %p91 = scmp.eq.s32.totalorder %s27, 1
      %p92 = por %p90, %p91
      %p94 = scmp.ne.s32.totalorder %s79, %s93
      %p95 = scmp.eq.s32.totalorder %s27, 0
      %p96 = por %p94, %p95
      %s98 = sadd.s32 %s97, 1
      %p101 = scmp.eq.s32.totalorder %s21, 1
      %p102 = scmp.ne.s32.totalorder %s97, %s99
      %p103 = scmp.eq.s32.totalorder %s21, 0
      %p104 = por %p102, %p103
      %p105 = scmp.ne.s32.totalorder %s97, %s99
      %p106 = scmp.eq.s32.totalorder %s26, 1
      %p107 = por %p105, %p106
      %p108 = scmp.ne.s32.totalorder %s99, %s100
      %p109 = scmp.eq.s32.totalorder %s26, 0
      %p110 = por %p108, %p109
      %p111 = scmp.ne.s32.totalorder %s99, %s100
      %p112 = scmp.eq.s32.totalorder %s27, 1
      %p113 = por %p111, %p112
      %p115 = scmp.ne.s32.totalorder %s100, %s114
      %p116 = scmp.eq.s32.totalorder %s27, 0
      %p117 = por %p115, %p116
      %s119 = sadd.s32 %s118, 1
      %p122 = scmp.eq.s32.totalorder %s21, 1
      %p123 = scmp.ne.s32.totalorder %s118, %s120
      %p124 = scmp.eq.s32.totalorder %s21, 0
      %p125 = por %p123, %p124
      %p126 = scmp.ne.s32.totalorder %s118, %s120
      %p127 = scmp.eq.s32.totalorder %s26, 1
      %p128 = por %p126, %p127
      %p129 = scmp.ne.s32.totalorder %s120, %s121
      %p130 = scmp.eq.s32.totalorder %s26, 0
      %p131 = por %p129, %p130
      %p132 = scmp.ne.s32.totalorder %s120, %s121
      %p133 = scmp.eq.s32.totalorder %s27, 1
      %p134 = por %p132, %p133
      %p136 = scmp.ne.s32.totalorder %s121, %s135
      %p137 = scmp.eq.s32.totalorder %s27, 0
      %p138 = por %p136, %p137
      %s140 = sadd.s32 %s139, 1
      %p143 = scmp.eq.s32.totalorder %s21, 1
      %p144 = scmp.ne.s32.totalorder %s139, %s141
      %p145 = scmp.eq.s32.totalorder %s21, 0
      %p146 = por %p144, %p145
      %p147 = scmp.ne.s32.totalorder %s139, %s141
      %p148 = scmp.eq.s32.totalorder %s26, 1
      %p149 = por %p147, %p148
      %p150 = scmp.ne.s32.totalorder %s141, %s142
      %p151 = scmp.eq.s32.totalorder %s26, 0
      %p152 = por %p150, %p151
      %p153 = scmp.ne.s32.totalorder %s141, %s142
      %p154 = scmp.eq.s32.totalorder %s27, 1
      %p155 = por %p153, %p154
      %p157 = scmp.ne.s32.totalorder %s142, %s156
      %p158 = scmp.eq.s32.totalorder %s27, 0
      %p159 = por %p157, %p158
      %s161 = sadd.s32 %s160, 1
      %p164 = scmp.eq.s32.totalorder %s21, 1
      %p165 = scmp.ne.s32.totalorder %s160, %s162
      %p166 = scmp.eq.s32.totalorder %s21, 0
      %p167 = por %p165, %p166
      %p168 = scmp.ne.s32.totalorder %s160, %s162
      %p169 = scmp.eq.s32.totalorder %s26, 1
      %p170 = por %p168, %p169
      %p171 = scmp.ne.s32.totalorder %s162, %s163
      %p172 = scmp.eq.s32.totalorder %s26, 0
      %p173 = por %p171, %p172
      %p174 = scmp.ne.s32.totalorder %s162, %s163
      %p175 = scmp.eq.s32.totalorder %s27, 1
      %p176 = por %p174, %p175
      %p178 = scmp.ne.s32.totalorder %s163, %s177
      %p179 = scmp.eq.s32.totalorder %s27, 0
      %p180 = por %p178, %p179
      %s182 = sadd.s32 %s181, 1
      %p185 = scmp.eq.s32.totalorder %s21, 1
      %p186 = scmp.ne.s32.totalorder %s181, %s183
      %p187 = scmp.eq.s32.totalorder %s21, 0
      %p188 = por %p186, %p187
      %p189 = scmp.ne.s32.totalorder %s181, %s183
      %p190 = scmp.eq.s32.totalorder %s26, 1
      %p191 = por %p189, %p190
      %p192 = scmp.ne.s32.totalorder %s183, %s184
      %p193 = scmp.eq.s32.totalorder %s26, 0
      %p194 = por %p192, %p193
      %p195 = scmp.ne.s32.totalorder %s183, %s184
      %p196 = scmp.eq.s32.totalorder %s27, 1
      %p197 = por %p195, %p196
      %p199 = scmp.ne.s32.totalorder %s184, %s198
      %p200 = scmp.eq.s32.totalorder %s27, 0
      %p201 = por %p199, %p200
      %s203 = sadd.s32 %s202, 1
      %p206 = scmp.eq.s32.totalorder %s21, 1
      %p207 = scmp.ne.s32.totalorder %s202, %s204
      %p208 = scmp.eq.s32.totalorder %s21, 0
      %p209 = por %p207, %p208
      %p210 = scmp.ne.s32.totalorder %s202, %s204
      %p211 = scmp.eq.s32.totalorder %s26, 1
      %p212 = por %p210, %p211
      %p213 = scmp.ne.s32.totalorder %s204, %s205
      %p214 = scmp.eq.s32.totalorder %s26, 0
      %p215 = por %p213, %p214
      %p216 = scmp.ne.s32.totalorder %s204, %s205
      %p217 = scmp.eq.s32.totalorder %s27, 1
      %p218 = por %p216, %p217
      %p220 = scmp.ne.s32.totalorder %s205, %s219
      %p221 = scmp.eq.s32.totalorder %s27, 0
      %p222 = por %p220, %p221
      %s223 = ssub.s32 %s21, %s28
      %p224 = scmp.eq.s32.totalorder %s223, 0
      %s226 = sadd.s32 %s225, 1
      %s227 = scalar_select %p224, %s225, %s226
      %p230 = pneg %p224
      %p231 = scmp.eq.s32.totalorder %s21, 1
      %p232 = por %p230, %p231
      %p233 = scmp.ne.s32.totalorder %s225, %s228
      %p234 = scmp.eq.s32.totalorder %s21, 0
      %p235 = por %p233, %p234
      %p236 = scmp.ne.s32.totalorder %s225, %s228
      %p237 = scmp.eq.s32.totalorder %s26, 1
      %p238 = por %p236, %p237
      %p239 = scmp.ne.s32.totalorder %s228, %s229
      %p240 = scmp.eq.s32.totalorder %s26, 0
      %p241 = por %p239, %p240
      %p242 = scmp.ne.s32.totalorder %s228, %s229
      %p243 = scmp.eq.s32.totalorder %s27, 1
      %p244 = por %p242, %p243
      %p246 = scmp.ne.s32.totalorder %s229, %s245
      %p247 = scmp.eq.s32.totalorder %s27, 0
      %p248 = por %p246, %p247
      %p249 = scmp.le.s32.totalorder 1, %s21
      %p250 = scmp.lt.s32.totalorder %s21, 3
      %p251 = pnand %p249, %p250
      %p252 = pneg %p251
      // Predicated region
      $region9: #{tpu_custom_call.1} parent=5 // pred_check
        _
      $region10: #{tpu_custom_call.1} parent=5 // pred_check_branch
        %254 = sbr.rel (%p251) target = $region12
      $region11: #{tpu_custom_call.1} parent=5 // pred_region
        %s255 = ssub.s32 %s21, 1
        // Predicated region
        $region13: #{tpu_custom_call.1} parent=11 // pred_check
          %p256 = pneg %p68
        $region14: #{tpu_custom_call.1} parent=11 // pred_check_branch
          %258 = sbr.rel (%p256) target = $region16
        $region15: #{tpu_custom_call.1} parent=11 // pred_region
          _
        $region16: #{tpu_custom_call.1} parent=11 // pred_fallthru
          _
        // Predicated region
        $region17: #{tpu_custom_call.1} parent=11 // pred_check
          %p259 = pneg %p89
        $region18: #{tpu_custom_call.1} parent=11 // pred_check_branch
          %261 = sbr.rel (%p259) target = $region20
        $region19: #{tpu_custom_call.1} parent=11 // pred_region
          _
        $region20: #{tpu_custom_call.1} parent=11 // pred_fallthru
          _
        // Predicated region
        $region21: #{tpu_custom_call.1} parent=11 // pred_check
          %p262 = pneg %p110
        $region22: #{tpu_custom_call.1} parent=11 // pred_check_branch
          %264 = sbr.rel (%p262) target = $region24
        $region23: #{tpu_custom_call.1} parent=11 // pred_region
          %s266 = ssub.s32 8192, 8192
          %267 = vsyncadd [#allocation4], %s266
          %s268 = sshll.u32 [#allocation3], 4
          %s269 = int_to_ptr.vmem [resolvable:$true] %s268
          %274 = dma.hbm_to_vmem [thread:$0]  %s3, 8192, %s269, [#allocation4], 128, 128, 8
        $region24: #{tpu_custom_call.1} parent=11 // pred_fallthru
          _
        // Predicated region
        $region25: #{tpu_custom_call.1} parent=11 // pred_check
          %p275 = pneg %p131
        $region26: #{tpu_custom_call.1} parent=11 // pred_check_branch
          %277 = sbr.rel (%p275) target = $region28
        $region27: #{tpu_custom_call.1} parent=11 // pred_region
          _
        $region28: #{tpu_custom_call.1} parent=11 // pred_fallthru
          _
        // Predicated region
        $region29: #{tpu_custom_call.1} parent=11 // pred_check
          %p278 = pneg %p152
        $region30: #{tpu_custom_call.1} parent=11 // pred_check_branch
          %280 = sbr.rel (%p278) target = $region32
        $region31: #{tpu_custom_call.1} parent=11 // pred_region
          _
        $region32: #{tpu_custom_call.1} parent=11 // pred_fallthru
          _
        // Predicated region
        $region33: #{tpu_custom_call.1} parent=11 // pred_check
          %p281 = pneg %p173
        $region34: #{tpu_custom_call.1} parent=11 // pred_check_branch
          %283 = sbr.rel (%p281) target = $region36
        $region35: #{tpu_custom_call.1} parent=11 // pred_region
          _
        $region36: #{tpu_custom_call.1} parent=11 // pred_fallthru
          _
        // Predicated region
        $region37: #{tpu_custom_call.1} parent=11 // pred_check
          %p284 = pneg %p194
        $region38: #{tpu_custom_call.1} parent=11 // pred_check_branch
          %286 = sbr.rel (%p284) target = $region40
        $region39: #{tpu_custom_call.1} parent=11 // pred_region
          _
        $region40: #{tpu_custom_call.1} parent=11 // pred_fallthru
          _
        // Predicated region
        $region41: #{tpu_custom_call.1} parent=11 // pred_check
          %p287 = pneg %p215
        $region42: #{tpu_custom_call.1} parent=11 // pred_check_branch
          %289 = sbr.rel (%p287) target = $region44
        $region43: #{tpu_custom_call.1} parent=11 // pred_region
          _
        $region44: #{tpu_custom_call.1} parent=11 // pred_fallthru
          _
      $region12: #{tpu_custom_call.1} parent=5 // pred_fallthru
        _
      %p290 = scmp.lt.s32.totalorder %s21, 2
      // Predicated region
      $region45: #{tpu_custom_call.1} parent=5 // pred_check
        %p291 = pneg %p290
      $region46: #{tpu_custom_call.1} parent=5 // pred_check_branch
        %293 = sbr.rel (%p291) target = $region48
      $region47: #{tpu_custom_call.1} parent=5 // pred_region
        // Predicated region
        $region49: #{tpu_custom_call.1} parent=47 // pred_check
          %p294 = pneg %p41
        $region50: #{tpu_custom_call.1} parent=47 // pred_check_branch
          %296 = sbr.rel (%p294) target = $region52
        $region51: #{tpu_custom_call.1} parent=47 // pred_region
          %s297 = smul.u32 16, %s21
          %p298 = scmp.lt.s32.totalorder %s297, 31
          %s299 = scalar_select %p298, %s297, 31
          %s300 = smul.addr %s299, 8
          %s301 = scalar_lea.vmem %s0, %s300
          %s302 = smul.u32 16, %s21
        $region52: #{tpu_custom_call.1} parent=47 // pred_fallthru
          _
      $region48: #{tpu_custom_call.1} parent=5 // pred_fallthru
        _
      %p303 = scmp.le.s32.totalorder 1, %s21
      %p304 = scmp.lt.s32.totalorder %s21, 3
      %p305 = pnand %p303, %p304
      %p306 = pneg %p305
      // Predicated region
      $region53: #{tpu_custom_call.1} parent=5 // pred_check
        _
      $region54: #{tpu_custom_call.1} parent=5 // pred_check_branch
        %308 = sbr.rel (%p305) target = $region56
      $region55: #{tpu_custom_call.1} parent=5 // pred_region
        %s309 = ssub.s32 %s21, 1
        // Predicated region
        $region57: #{tpu_custom_call.1} parent=55 // pred_check
          %p310 = pneg %p110
        $region58: #{tpu_custom_call.1} parent=55 // pred_check_branch
          %312 = sbr.rel (%p310) target = $region60
        $region59: #{tpu_custom_call.1} parent=55 // pred_region
          %313 = dma.done [#allocation4], 8192
        $region60: #{tpu_custom_call.1} parent=55 // pred_fallthru
          _
        %s314 = smul.u32 16, %s26
        %p315 = scmp.lt.s32.totalorder %s314, 31
        %s316 = scalar_select %p315, %s314, 31
        %s317 = smul.addr %s316, 8
        %s318 = scalar_lea.vmem %s0, %s317
        %p319 = pneg %p47
        %p320 = pneg %p44
        %p321 = pneg %p68
        %p322 = pneg %p65
        %p323 = pneg %p89
        %p324 = pneg %p86
        %p325 = pneg %p110
        %p326 = pneg %p107
        %p327 = pneg %p131
        %p328 = pneg %p128
        %p329 = pneg %p152
        %p330 = pneg %p149
        %p331 = pneg %p173
        %p332 = pneg %p170
        %p333 = pneg %p194
        %p334 = pneg %p191
        %p335 = pneg %p215
        %p336 = pneg %p212
        %p337 = pneg %p241
        %p338 = pneg %p238
        %s339 = sand.u32 %s228, 1
        %s340 = scalar_lea.sflag [#allocation5], %s339
        %s341 = sand.u32 %s228, 1
        %s342 = scalar_lea.vmem [#allocation6], %s341
        %s343 = smul.u32 16, %s26
        %p344 = scmp.lt.s32.totalorder %s343, 31
        %s345 = scalar_select %p344, %s343, 31
        %s346 = smul.addr %s345, 8
        %s347 = scalar_lea.vmem %s0, %s346
        %s348 = smul.u32 16, %s26
        %v350 = vld [vmem:[%s347] sm:$0xff]
        %v351 = vld [vmem:[%s347 + $0x8] sm:$0xff]
        %v352 = vld [vmem:[%s347 + $0x10] sm:$0xff]
        %v353 = vld [vmem:[%s347 + $0x18] sm:$0xff]
        %v354 = vld [vmem:[%s347 + $0x20] sm:$0xff]
        %v355 = vld [vmem:[%s347 + $0x28] sm:$0xff]
        %v356 = vld [vmem:[%s347 + $0x30] sm:$0xff]
        %v357 = vld [vmem:[%s347 + $0x38] sm:$0xff]
        %v358 = vld [vmem:[%s347 + $0x40] sm:$0xff]
        %v359 = vld [vmem:[%s347 + $0x48] sm:$0xff]
        %v360 = vld [vmem:[%s347 + $0x50] sm:$0xff]
        %v361 = vld [vmem:[%s347 + $0x58] sm:$0xff]
        %v362 = vld [vmem:[%s347 + $0x60] sm:$0xff]
        %v363 = vld [vmem:[%s347 + $0x68] sm:$0xff]
        %v364 = vld [vmem:[%s347 + $0x70] sm:$0xff]
        %v365 = vld [vmem:[%s347 + $0x78] sm:$0xff]
        %v366 = vpack.c.bf16 %v351, %v350
        %v367 = vpack.c.bf16 %v353, %v352
        %v368 = vpack.c.bf16 %v355, %v354
        %v369 = vpack.c.bf16 %v357, %v356
        %v370 = vpack.c.bf16 %v359, %v358
        %v371 = vpack.c.bf16 %v361, %v360
        %v372 = vpack.c.bf16 %v363, %v362
        %v373 = vpack.c.bf16 %v365, %v364
        %v374 = vld [vmem:[%s1] sm:$0xff]
        %v375 = vld [vmem:[%s1 + $0x8] sm:$0xff]
        %v376 = vld [vmem:[%s1 + $0x10] sm:$0xff]
        %v377 = vld [vmem:[%s1 + $0x18] sm:$0xff]
        %v378 = vld [vmem:[%s1 + $0x20] sm:$0xff]
        %v379 = vld [vmem:[%s1 + $0x28] sm:$0xff]
        %v380 = vld [vmem:[%s1 + $0x30] sm:$0xff]
        %v381 = vld [vmem:[%s1 + $0x38] sm:$0xff]
        %v382 = vld [vmem:[%s2] sm:$0xf]
        %v384 = vlaneseq
        %v385 = vshrl.u32 %v384, 7
        %v386 = vsub.s32 0, %v385
        %v387 = vrot.slane %v382, %v386
        %v388 = vlaneseq
        %v389 = vshrl.u32 %v388, 7
        %v390 = vsub.s32 1, %v389
        %v391 = vrot.slane %v382, %v390
        %v392 = vlaneseq
        %v393 = vshrl.u32 %v392, 7
        %v394 = vsub.s32 2, %v393
        %v395 = vrot.slane %v382, %v394
        %v396 = vlaneseq
        %v397 = vshrl.u32 %v396, 7
        %v398 = vsub.s32 3, %v397
        %v399 = vrot.slane %v382, %v398
        %v412 = vunpack.c.l.b16 %v374
        %v413 = vunpack.c.h.b16 %v374
        %v414 = vunpack.c.l.b16 %v375
        %v415 = vunpack.c.h.b16 %v375
        %v416 = vunpack.c.l.b16 %v376
        %v417 = vunpack.c.h.b16 %v376
        %v418 = vunpack.c.l.b16 %v377
        %v419 = vunpack.c.h.b16 %v377
        %v420 = vunpack.c.l.b16 %v378
        %v421 = vunpack.c.h.b16 %v378
        %v422 = vunpack.c.l.b16 %v379
        %v423 = vunpack.c.h.b16 %v379
        %v424 = vunpack.c.l.b16 %v380
        %v425 = vunpack.c.h.b16 %v380
        %v426 = vunpack.c.l.b16 %v381
        %v427 = vunpack.c.h.b16 %v381
        %v428 = vpack.c.b16 %v416, %v412
        %v429 = vpack.c.b16 %v417, %v413
        %v430 = vpack.c.b16 %v418, %v414
        %v431 = vpack.c.b16 %v419, %v415
        %v432 = vpack.c.b16 %v424, %v420
        %v433 = vpack.c.b16 %v425, %v421
        %v434 = vpack.c.b16 %v426, %v422
        %v435 = vpack.c.b16 %v427, %v423
        %vm444 = vcmask 261120
        %v446 = vsel %vm444, %v366, 0
        %v449 = vsel %vm444, %v367, 0
        %v452 = vsel %vm444, %v368, 0
        %v455 = vsel %vm444, %v369, 0
        %v458 = vsel %vm444, %v370, 0
        %v461 = vsel %vm444, %v371, 0
        %v464 = vsel %vm444, %v372, 0
        %v467 = vsel %vm444, %v373, 0
        %469 = vmatprep.subr.bf16.mxu0 %v429
        %470 = vmatpush1.bf16.msra.mxu0 %v428
        %471 = vmatprep.subr.bf16.mxu0 %v433
        %472 = vmatpush1.bf16.msra.mxu0 %v432
        %473 = vmatprep.subr.bf16.mxu0 0
        %474 = vmatpush1.bf16.msra.mxu0 0
        %475 = vmatprep.subr.bf16.mxu0 0
        %476 = vmatpush1.bf16.msra.mxu0 0
        %477 = vmatprep.subr.bf16.mxu0 0
        %478 = vmatpush1.bf16.msra.mxu0 0
        %479 = vmatprep.subr.bf16.mxu0 0
        %480 = vmatpush1.bf16.msra.mxu0 0
        %481 = vmatprep.subr.bf16.mxu0 0
        %482 = vmatpush1.bf16.msra.mxu0 0
        %483 = vmatprep.subr.bf16.mxu0 0
        %484 = vmatpush1.bf16.msra.mxu0 0
        %485 = vmatprep.subr.bf16.mxu0 0
        %486 = vmatpush1.bf16.msra.mxu0 0
        %487 = vmatprep.subr.bf16.mxu0 0
        %488 = vmatpush1.bf16.msra.mxu0 0
        %489 = vmatprep.subr.bf16.mxu0 0
        %490 = vmatpush1.bf16.msra.mxu0 0
        %491 = vmatprep.subr.bf16.mxu0 0
        %492 = vmatpush1.bf16.msra.mxu0 0
        %493 = vmatprep.subr.bf16.mxu0 0
        %494 = vmatpush1.bf16.msra.mxu0 0
        %495 = vmatprep.subr.bf16.mxu0 0
        %496 = vmatpush1.bf16.msra.mxu0 0
        %497 = vmatprep.subr.bf16.mxu0 0
        %498 = vmatpush1.bf16.msra.mxu0 0
        %499 = vmatprep.subr.bf16.mxu0 0
        %500 = vmatpush1.bf16.msra.mxu0 0
        %501 = vmatprep.mubr.bf16.mxu0 0
        %502 = vmatmul.mubr.bf16.gmra.mrb[0].mxu0 %v446
        %v503 = vpop.f32.mrb[0].mxu0
        %v504 = vadd.f32 %v387, %v503
        %v505 = vpop.f32.mrb[0].mxu0
        %v506 = vadd.f32 %v391, %v505
        %v507 = vpop.f32.mrb[0].mxu0
        %v508 = vadd.f32 %v387, %v507
        %v509 = vpop.f32.mrb[0].mxu0
        %v510 = vadd.f32 %v391, %v509
        %511 = vmatprep.mubr.bf16.mxu0 0
        %512 = vmatmul.mubr.bf16.gmra.mrb[0].mxu0 %v449
        %v513 = vpop.f32.mrb[0].mxu0
        %v514 = vadd.f32 %v387, %v513
        %v515 = vpop.f32.mrb[0].mxu0
        %v516 = vadd.f32 %v391, %v515
        %v517 = vpop.f32.mrb[0].mxu0
        %v518 = vadd.f32 %v387, %v517
        %v519 = vpop.f32.mrb[0].mxu0
        %v520 = vadd.f32 %v391, %v519
        %521 = vmatprep.mubr.bf16.mxu0 0
        %522 = vmatmul.mubr.bf16.gmra.mrb[0].mxu0 %v452
        %v523 = vpop.f32.mrb[0].mxu0
        %v524 = vadd.f32 %v387, %v523
        %v525 = vpop.f32.mrb[0].mxu0
        %v526 = vadd.f32 %v391, %v525
        %v527 = vpop.f32.mrb[0].mxu0
        %v528 = vadd.f32 %v387, %v527
        %v529 = vpop.f32.mrb[0].mxu0
        %v530 = vadd.f32 %v391, %v529
        %531 = vmatprep.mubr.bf16.mxu0 0
        %532 = vmatmul.mubr.bf16.gmra.mrb[0].mxu0 %v455
        %v533 = vpop.f32.mrb[0].mxu0
        %v534 = vadd.f32 %v387, %v533
        %v535 = vpop.f32.mrb[0].mxu0
        %v536 = vadd.f32 %v391, %v535
        %v537 = vpop.f32.mrb[0].mxu0
        %v538 = vadd.f32 %v387, %v537
        %v539 = vpop.f32.mrb[0].mxu0
        %v540 = vadd.f32 %v391, %v539
        %541 = vmatprep.mubr.bf16.mxu0 0
        %542 = vmatmul.mubr.bf16.gmra.mrb[0].mxu0 %v458
        %v543 = vpop.f32.mrb[0].mxu0
        %v544 = vadd.f32 %v387, %v543
        %v545 = vpop.f32.mrb[0].mxu0
        %v546 = vadd.f32 %v391, %v545
        %v547 = vpop.f32.mrb[0].mxu0
        %v548 = vadd.f32 %v387, %v547
        %v549 = vpop.f32.mrb[0].mxu0
        %v550 = vadd.f32 %v391, %v549
        %551 = vmatprep.mubr.bf16.mxu0 0
        %552 = vmatmul.mubr.bf16.gmra.mrb[0].mxu0 %v461
        %v553 = vpop.f32.mrb[0].mxu0
        %v554 = vadd.f32 %v387, %v553
        %v555 = vpop.f32.mrb[0].mxu0
        %v556 = vadd.f32 %v391, %v555
        %v557 = vpop.f32.mrb[0].mxu0
        %v558 = vadd.f32 %v387, %v557
        %v559 = vpop.f32.mrb[0].mxu0
        %v560 = vadd.f32 %v391, %v559
        %561 = vmatprep.mubr.bf16.mxu0 0
        %562 = vmatmul.mubr.bf16.gmra.mrb[0].mxu0 %v464
        %v563 = vpop.f32.mrb[0].mxu0
        %v564 = vadd.f32 %v387, %v563
        %v565 = vpop.f32.mrb[0].mxu0
        %v566 = vadd.f32 %v391, %v565
        %v567 = vpop.f32.mrb[0].mxu0
        %v568 = vadd.f32 %v387, %v567
        %v569 = vpop.f32.mrb[0].mxu0
        %v570 = vadd.f32 %v391, %v569
        %571 = vmatprep.mubr.bf16.mxu0 0
        %572 = vmatmul.mubr.bf16.gmra.mrb[0].mxu0 %v467
        %v573 = vpop.f32.mrb[0].mxu0
        %v574 = vadd.f32 %v387, %v573
        %v575 = vpop.f32.mrb[0].mxu0
        %v576 = vadd.f32 %v391, %v575
        %v577 = vpop.f32.mrb[0].mxu0
        %v578 = vadd.f32 %v387, %v577
        %v579 = vpop.f32.mrb[0].mxu0
        %v580 = vadd.f32 %v391, %v579
        %581 = vdwg.mxu0
        %582 = vmatprep.subr.bf16.mxu0 %v431
        %583 = vmatpush1.bf16.msra.mxu0 %v430
        %584 = vmatprep.subr.bf16.mxu0 %v435
        %585 = vmatpush1.bf16.msra.mxu0 %v434
        %586 = vmatprep.subr.bf16.mxu0 0
        %587 = vmatpush1.bf16.msra.mxu0 0
        %588 = vmatprep.subr.bf16.mxu0 0
        %589 = vmatpush1.bf16.msra.mxu0 0
        %590 = vmatprep.subr.bf16.mxu0 0
        %591 = vmatpush1.bf16.msra.mxu0 0
        %592 = vmatprep.subr.bf16.mxu0 0
        %593 = vmatpush1.bf16.msra.mxu0 0
        %594 = vmatprep.subr.bf16.mxu0 0
        %595 = vmatpush1.bf16.msra.mxu0 0
        %596 = vmatprep.subr.bf16.mxu0 0
        %597 = vmatpush1.bf16.msra.mxu0 0
        %598 = vmatprep.subr.bf16.mxu0 0
        %599 = vmatpush1.bf16.msra.mxu0 0
        %600 = vmatprep.subr.bf16.mxu0 0
        %601 = vmatpush1.bf16.msra.mxu0 0
        %602 = vmatprep.subr.bf16.mxu0 0
        %603 = vmatpush1.bf16.msra.mxu0 0
        %604 = vmatprep.subr.bf16.mxu0 0
        %605 = vmatpush1.bf16.msra.mxu0 0
        %606 = vmatprep.subr.bf16.mxu0 0
        %607 = vmatpush1.bf16.msra.mxu0 0
        %608 = vmatprep.subr.bf16.mxu0 0
        %609 = vmatpush1.bf16.msra.mxu0 0
        %610 = vmatprep.subr.bf16.mxu0 0
        %611 = vmatpush1.bf16.msra.mxu0 0
        %612 = vmatprep.subr.bf16.mxu0 0
        %613 = vmatpush1.bf16.msra.mxu0 0
        %614 = vmatprep.mubr.bf16.mxu0 0
        %615 = vmatmul.mubr.bf16.gmra.mrb[0].mxu0 %v446
        %v616 = vpop.f32.mrb[0].mxu0
        %v617 = vadd.f32 %v395, %v616
        %v618 = vpop.f32.mrb[0].mxu0
        %v619 = vadd.f32 %v399, %v618
        %v620 = vpop.f32.mrb[0].mxu0
        %v621 = vadd.f32 %v395, %v620
        %v622 = vpop.f32.mrb[0].mxu0
        %v623 = vadd.f32 %v399, %v622
        %624 = vmatprep.mubr.bf16.mxu0 0
        %625 = vmatmul.mubr.bf16.gmra.mrb[0].mxu0 %v449
        %v626 = vpop.f32.mrb[0].mxu0
        %v627 = vadd.f32 %v395, %v626
        %v628 = vpop.f32.mrb[0].mxu0
        %v629 = vadd.f32 %v399, %v628
        %v630 = vpop.f32.mrb[0].mxu0
        %v631 = vadd.f32 %v395, %v630
        %v632 = vpop.f32.mrb[0].mxu0
        %v633 = vadd.f32 %v399, %v632
        %634 = vmatprep.mubr.bf16.mxu0 0
        %635 = vmatmul.mubr.bf16.gmra.mrb[0].mxu0 %v452
        %v636 = vpop.f32.mrb[0].mxu0
        %v637 = vadd.f32 %v395, %v636
        %v638 = vpop.f32.mrb[0].mxu0
        %v639 = vadd.f32 %v399, %v638
        %v640 = vpop.f32.mrb[0].mxu0
        %v641 = vadd.f32 %v395, %v640
        %v642 = vpop.f32.mrb[0].mxu0
        %v643 = vadd.f32 %v399, %v642
        %644 = vmatprep.mubr.bf16.mxu0 0
        %645 = vmatmul.mubr.bf16.gmra.mrb[0].mxu0 %v455
        %v646 = vpop.f32.mrb[0].mxu0
        %v647 = vadd.f32 %v395, %v646
        %v648 = vpop.f32.mrb[0].mxu0
        %v649 = vadd.f32 %v399, %v648
        %v650 = vpop.f32.mrb[0].mxu0
        %v651 = vadd.f32 %v395, %v650
        %v652 = vpop.f32.mrb[0].mxu0
        %v653 = vadd.f32 %v399, %v652
        %654 = vmatprep.mubr.bf16.mxu0 0
        %655 = vmatmul.mubr.bf16.gmra.mrb[0].mxu0 %v458
        %v656 = vpop.f32.mrb[0].mxu0
        %v657 = vadd.f32 %v395, %v656
        %v658 = vpop.f32.mrb[0].mxu0
        %v659 = vadd.f32 %v399, %v658
        %v660 = vpop.f32.mrb[0].mxu0
        %v661 = vadd.f32 %v395, %v660
        %v662 = vpop.f32.mrb[0].mxu0
        %v663 = vadd.f32 %v399, %v662
        %664 = vmatprep.mubr.bf16.mxu0 0
        %665 = vmatmul.mubr.bf16.gmra.mrb[0].mxu0 %v461
        %v666 = vpop.f32.mrb[0].mxu0
        %v667 = vadd.f32 %v395, %v666
        %v668 = vpop.f32.mrb[0].mxu0
        %v669 = vadd.f32 %v399, %v668
        %v670 = vpop.f32.mrb[0].mxu0
        %v671 = vadd.f32 %v395, %v670
        %v672 = vpop.f32.mrb[0].mxu0
        %v673 = vadd.f32 %v399, %v672
        %674 = vmatprep.mubr.bf16.mxu0 0
        %675 = vmatmul.mubr.bf16.gmra.mrb[0].mxu0 %v464
        %v676 = vpop.f32.mrb[0].mxu0
        %v677 = vadd.f32 %v395, %v676
        %v678 = vpop.f32.mrb[0].mxu0
        %v679 = vadd.f32 %v399, %v678
        %v680 = vpop.f32.mrb[0].mxu0
        %v681 = vadd.f32 %v395, %v680
        %v682 = vpop.f32.mrb[0].mxu0
        %v683 = vadd.f32 %v399, %v682
        %684 = vmatprep.mubr.bf16.mxu0 0
        %685 = vmatmul.mubr.bf16.gmra.mrb[0].mxu0 %v467
        %v686 = vpop.f32.mrb[0].mxu0
        %v687 = vadd.f32 %v395, %v686
        %v688 = vpop.f32.mrb[0].mxu0
        %v689 = vadd.f32 %v399, %v688
        %v690 = vpop.f32.mrb[0].mxu0
        %v691 = vadd.f32 %v395, %v690
        %v692 = vpop.f32.mrb[0].mxu0
        %v693 = vadd.f32 %v399, %v692
        %694 = vdwg.mxu0
        %v695 = vmax.f32 %v504, 0.0
        %v696 = vmax.f32 %v506, 0.0
        %v697 = vmax.f32 %v617, 0.0
        %v698 = vmax.f32 %v619, 0.0
        %v699 = vmax.f32 %v508, 0.0
        %v700 = vmax.f32 %v510, 0.0
        %v701 = vmax.f32 %v621, 0.0
        %v702 = vmax.f32 %v623, 0.0
        %v703 = vmax.f32 %v514, 0.0
        %v704 = vmax.f32 %v516, 0.0
        %v705 = vmax.f32 %v627, 0.0
        %v706 = vmax.f32 %v629, 0.0
        %v707 = vmax.f32 %v518, 0.0
        %v708 = vmax.f32 %v520, 0.0
        %v709 = vmax.f32 %v631, 0.0
        %v710 = vmax.f32 %v633, 0.0
        %v711 = vmax.f32 %v524, 0.0
        %v712 = vmax.f32 %v526, 0.0
        %v713 = vmax.f32 %v637, 0.0
        %v714 = vmax.f32 %v639, 0.0
        %v715 = vmax.f32 %v528, 0.0
        %v716 = vmax.f32 %v530, 0.0
        %v717 = vmax.f32 %v641, 0.0
        %v718 = vmax.f32 %v643, 0.0
        %v719 = vmax.f32 %v534, 0.0
        %v720 = vmax.f32 %v536, 0.0
        %v721 = vmax.f32 %v647, 0.0
        %v722 = vmax.f32 %v649, 0.0
        %v723 = vmax.f32 %v538, 0.0
        %v724 = vmax.f32 %v540, 0.0
        %v725 = vmax.f32 %v651, 0.0
        %v726 = vmax.f32 %v653, 0.0
        %v727 = vmax.f32 %v544, 0.0
        %v728 = vmax.f32 %v546, 0.0
        %v729 = vmax.f32 %v657, 0.0
        %v730 = vmax.f32 %v659, 0.0
        %v731 = vmax.f32 %v548, 0.0
        %v732 = vmax.f32 %v550, 0.0
        %v733 = vmax.f32 %v661, 0.0
        %v734 = vmax.f32 %v663, 0.0
        %v735 = vmax.f32 %v554, 0.0
        %v736 = vmax.f32 %v556, 0.0
        %v737 = vmax.f32 %v667, 0.0
        %v738 = vmax.f32 %v669, 0.0
        %v739 = vmax.f32 %v558, 0.0
        %v740 = vmax.f32 %v560, 0.0
        %v741 = vmax.f32 %v671, 0.0
        %v742 = vmax.f32 %v673, 0.0
        %v743 = vmax.f32 %v564, 0.0
        %v744 = vmax.f32 %v566, 0.0
        %v745 = vmax.f32 %v677, 0.0
        %v746 = vmax.f32 %v679, 0.0
        %v747 = vmax.f32 %v568, 0.0
        %v748 = vmax.f32 %v570, 0.0
        %v749 = vmax.f32 %v681, 0.0
        %v750 = vmax.f32 %v683, 0.0
        %v751 = vmax.f32 %v574, 0.0
        %v752 = vmax.f32 %v576, 0.0
        %v753 = vmax.f32 %v687, 0.0
        %v754 = vmax.f32 %v689, 0.0
        %v755 = vmax.f32 %v578, 0.0
        %v756 = vmax.f32 %v580, 0.0
        %v757 = vmax.f32 %v691, 0.0
        %v758 = vmax.f32 %v693, 0.0
        %v759 = vpack.c.bf16 %v699, %v695
        %v760 = vpack.c.bf16 %v700, %v696
        %v761 = vpack.c.bf16 %v701, %v697
        %v762 = vpack.c.bf16 %v702, %v698
        %v763 = vpack.c.bf16 %v707, %v703
        %v764 = vpack.c.bf16 %v708, %v704
        %v765 = vpack.c.bf16 %v709, %v705
        %v766 = vpack.c.bf16 %v710, %v706
        %v767 = vpack.c.bf16 %v715, %v711
        %v768 = vpack.c.bf16 %v716, %v712
        %v769 = vpack.c.bf16 %v717, %v713
        %v770 = vpack.c.bf16 %v718, %v714
        %v771 = vpack.c.bf16 %v723, %v719
        %v772 = vpack.c.bf16 %v724, %v720
        %v773 = vpack.c.bf16 %v725, %v721
        %v774 = vpack.c.bf16 %v726, %v722
        %v775 = vpack.c.bf16 %v731, %v727
        %v776 = vpack.c.bf16 %v732, %v728
        %v777 = vpack.c.bf16 %v733, %v729
        %v778 = vpack.c.bf16 %v734, %v730
        %v779 = vpack.c.bf16 %v739, %v735
        %v780 = vpack.c.bf16 %v740, %v736
        %v781 = vpack.c.bf16 %v741, %v737
        %v782 = vpack.c.bf16 %v742, %v738
        %v783 = vpack.c.bf16 %v747, %v743
        %v784 = vpack.c.bf16 %v748, %v744
        %v785 = vpack.c.bf16 %v749, %v745
        %v786 = vpack.c.bf16 %v750, %v746
        %v787 = vpack.c.bf16 %v755, %v751
        %v788 = vpack.c.bf16 %v756, %v752
        %v789 = vpack.c.bf16 %v757, %v753
        %v790 = vpack.c.bf16 %v758, %v754
        %v791 = vld [vmem:[#allocation3] sm:$0xff]
        %v792 = vld [vmem:[#allocation3 + $0x8] sm:$0xff]
        %v793 = vld [vmem:[#allocation3 + $0x10] sm:$0xff]
        %v794 = vld [vmem:[#allocation3 + $0x18] sm:$0xff]
        %v795 = vld [vmem:[#allocation3 + $0x20] sm:$0xff]
        %v796 = vld [vmem:[#allocation3 + $0x28] sm:$0xff]
        %v797 = vld [vmem:[#allocation3 + $0x30] sm:$0xff]
        %v798 = vld [vmem:[#allocation3 + $0x38] sm:$0xff]
        %v799 = vld [vmem:[#allocation3 + $0x40] sm:$0xff]
        %v800 = vld [vmem:[#allocation3 + $0x48] sm:$0xff]
        %v801 = vld [vmem:[#allocation3 + $0x50] sm:$0xff]
        %v802 = vld [vmem:[#allocation3 + $0x58] sm:$0xff]
        %v803 = vld [vmem:[#allocation3 + $0x60] sm:$0xff]
        %v804 = vld [vmem:[#allocation3 + $0x68] sm:$0xff]
        %v805 = vld [vmem:[#allocation3 + $0x70] sm:$0xff]
        %v806 = vld [vmem:[#allocation3 + $0x78] sm:$0xff]
        %v807 = vld [vmem:[#allocation3 + $0x80] sm:$0xff]
        %v808 = vld [vmem:[#allocation3 + $0x88] sm:$0xff]
        %v809 = vld [vmem:[#allocation3 + $0x90] sm:$0xff]
        %v810 = vld [vmem:[#allocation3 + $0x98] sm:$0xff]
        %v811 = vld [vmem:[#allocation3 + $0xa0] sm:$0xff]
        %v812 = vld [vmem:[#allocation3 + $0xa8] sm:$0xff]
        %v813 = vld [vmem:[#allocation3 + $0xb0] sm:$0xff]
        %v814 = vld [vmem:[#allocation3 + $0xb8] sm:$0xff]
        %v815 = vld [vmem:[#allocation3 + $0xc0] sm:$0xff]
        %v816 = vld [vmem:[#allocation3 + $0xc8] sm:$0xff]
        %v817 = vld [vmem:[#allocation3 + $0xd0] sm:$0xff]
        %v818 = vld [vmem:[#allocation3 + $0xd8] sm:$0xff]
        %v819 = vld [vmem:[#allocation3 + $0xe0] sm:$0xff]
        %v820 = vld [vmem:[#allocation3 + $0xe8] sm:$0xff]
        %v821 = vld [vmem:[#allocation3 + $0xf0] sm:$0xff]
        %v822 = vld [vmem:[#allocation3 + $0xf8] sm:$0xff]
        %v823 = vld [vmem:[#allocation3 + $0x100] sm:$0xff]
        %v824 = vld [vmem:[#allocation3 + $0x108] sm:$0xff]
        %v825 = vld [vmem:[#allocation3 + $0x110] sm:$0xff]
        %v826 = vld [vmem:[#allocation3 + $0x118] sm:$0xff]
        %v827 = vld [vmem:[#allocation3 + $0x120] sm:$0xff]
        %v828 = vld [vmem:[#allocation3 + $0x128] sm:$0xff]
        %v829 = vld [vmem:[#allocation3 + $0x130] sm:$0xff]
        %v830 = vld [vmem:[#allocation3 + $0x138] sm:$0xff]
        %v831 = vld [vmem:[#allocation3 + $0x140] sm:$0xff]
        %v832 = vld [vmem:[#allocation3 + $0x148] sm:$0xff]
        %v833 = vld [vmem:[#allocation3 + $0x150] sm:$0xff]
        %v834 = vld [vmem:[#allocation3 + $0x158] sm:$0xff]
        %v835 = vld [vmem:[#allocation3 + $0x160] sm:$0xff]
        %v836 = vld [vmem:[#allocation3 + $0x168] sm:$0xff]
        %v837 = vld [vmem:[#allocation3 + $0x170] sm:$0xff]
        %v838 = vld [vmem:[#allocation3 + $0x178] sm:$0xff]
        %v839 = vld [vmem:[#allocation3 + $0x180] sm:$0xff]
        %v840 = vld [vmem:[#allocation3 + $0x188] sm:$0xff]
        %v841 = vld [vmem:[#allocation3 + $0x190] sm:$0xff]
        %v842 = vld [vmem:[#allocation3 + $0x198] sm:$0xff]
        %v843 = vld [vmem:[#allocation3 + $0x1a0] sm:$0xff]
        %v844 = vld [vmem:[#allocation3 + $0x1a8] sm:$0xff]
        %v845 = vld [vmem:[#allocation3 + $0x1b0] sm:$0xff]
        %v846 = vld [vmem:[#allocation3 + $0x1b8] sm:$0xff]
        %v847 = vld [vmem:[#allocation3 + $0x1c0] sm:$0xff]
        %v848 = vld [vmem:[#allocation3 + $0x1c8] sm:$0xff]
        %v849 = vld [vmem:[#allocation3 + $0x1d0] sm:$0xff]
        %v850 = vld [vmem:[#allocation3 + $0x1d8] sm:$0xff]
        %v851 = vld [vmem:[#allocation3 + $0x1e0] sm:$0xff]
        %v852 = vld [vmem:[#allocation3 + $0x1e8] sm:$0xff]
        %v853 = vld [vmem:[#allocation3 + $0x1f0] sm:$0xff]
        %v854 = vld [vmem:[#allocation3 + $0x1f8] sm:$0xff]
        %v855 = vld [vmem:[%s4] sm:$0x3]
        %v857 = vlaneseq
        %v858 = vshrl.u32 %v857, 7
        %v859 = vsub.s32 0, %v858
        %v860 = vrot.slane %v855, %v859
        %v861 = vlaneseq
        %v862 = vshrl.u32 %v861, 7
        %v863 = vsub.s32 1, %v862
        %v864 = vrot.slane %v855, %v863
        %v931 = vunpack.c.l.b16 %v791
        %v932 = vunpack.c.h.b16 %v791
        %v933 = vunpack.c.l.b16 %v792
        %v934 = vunpack.c.h.b16 %v792
        %v935 = vunpack.c.l.b16 %v793
        %v936 = vunpack.c.h.b16 %v793
        %v937 = vunpack.c.l.b16 %v794
        %v938 = vunpack.c.h.b16 %v794
        %v939 = vunpack.c.l.b16 %v795
        %v940 = vunpack.c.h.b16 %v795
        %v941 = vunpack.c.l.b16 %v796
        %v942 = vunpack.c.h.b16 %v796
        %v943 = vunpack.c.l.b16 %v797
        %v944 = vunpack.c.h.b16 %v797
        %v945 = vunpack.c.l.b16 %v798
        %v946 = vunpack.c.h.b16 %v798
        %v947 = vunpack.c.l.b16 %v799
        %v948 = vunpack.c.h.b16 %v799
        %v949 = vunpack.c.l.b16 %v800
        %v950 = vunpack.c.h.b16 %v800
        %v951 = vunpack.c.l.b16 %v801
        %v952 = vunpack.c.h.b16 %v801
        %v953 = vunpack.c.l.b16 %v802
        %v954 = vunpack.c.h.b16 %v802
        %v955 = vunpack.c.l.b16 %v803
        %v956 = vunpack.c.h.b16 %v803
        %v957 = vunpack.c.l.b16 %v804
        %v958 = vunpack.c.h.b16 %v804
        %v959 = vunpack.c.l.b16 %v805
        %v960 = vunpack.c.h.b16 %v805
        %v961 = vunpack.c.l.b16 %v806
        %v962 = vunpack.c.h.b16 %v806
        %v963 = vunpack.c.l.b16 %v807
        %v964 = vunpack.c.h.b16 %v807
        %v965 = vunpack.c.l.b16 %v808
        %v966 = vunpack.c.h.b16 %v808
        %v967 = vunpack.c.l.b16 %v809
        %v968 = vunpack.c.h.b16 %v809
        %v969 = vunpack.c.l.b16 %v810
        %v970 = vunpack.c.h.b16 %v810
        %v971 = vunpack.c.l.b16 %v811
        %v972 = vunpack.c.h.b16 %v811
        %v973 = vunpack.c.l.b16 %v812
        %v974 = vunpack.c.h.b16 %v812
        %v975 = vunpack.c.l.b16 %v813
        %v976 = vunpack.c.h.b16 %v813
        %v977 = vunpack.c.l.b16 %v814
        %v978 = vunpack.c.h.b16 %v814
        %v979 = vunpack.c.l.b16 %v815
        %v980 = vunpack.c.h.b16 %v815
        %v981 = vunpack.c.l.b16 %v816
        %v982 = vunpack.c.h.b16 %v816
        %v983 = vunpack.c.l.b16 %v817
        %v984 = vunpack.c.h.b16 %v817
        %v985 = vunpack.c.l.b16 %v818
        %v986 = vunpack.c.h.b16 %v818
        %v987 = vunpack.c.l.b16 %v819
        %v988 = vunpack.c.h.b16 %v819
        %v989 = vunpack.c.l.b16 %v820
        %v990 = vunpack.c.h.b16 %v820
        %v991 = vunpack.c.l.b16 %v821
        %v992 = vunpack.c.h.b16 %v821
        %v993 = vunpack.c.l.b16 %v822
        %v994 = vunpack.c.h.b16 %v822
        %v995 = vunpack.c.l.b16 %v823
        %v996 = vunpack.c.h.b16 %v823
        %v997 = vunpack.c.l.b16 %v824
        %v998 = vunpack.c.h.b16 %v824
        %v999 = vunpack.c.l.b16 %v825
        %v1000 = vunpack.c.h.b16 %v825
        %v1001 = vunpack.c.l.b16 %v826
        %v1002 = vunpack.c.h.b16 %v826
        %v1003 = vunpack.c.l.b16 %v827
        %v1004 = vunpack.c.h.b16 %v827
        %v1005 = vunpack.c.l.b16 %v828
        %v1006 = vunpack.c.h.b16 %v828
        %v1007 = vunpack.c.l.b16 %v829
        %v1008 = vunpack.c.h.b16 %v829
        %v1009 = vunpack.c.l.b16 %v830
        %v1010 = vunpack.c.h.b16 %v830
        %v1011 = vunpack.c.l.b16 %v831
        %v1012 = vunpack.c.h.b16 %v831
        %v1013 = vunpack.c.l.b16 %v832
        %v1014 = vunpack.c.h.b16 %v832
        %v1015 = vunpack.c.l.b16 %v833
        %v1016 = vunpack.c.h.b16 %v833
        %v1017 = vunpack.c.l.b16 %v834
        %v1018 = vunpack.c.h.b16 %v834
        %v1019 = vunpack.c.l.b16 %v835
        %v1020 = vunpack.c.h.b16 %v835
        %v1021 = vunpack.c.l.b16 %v836
        %v1022 = vunpack.c.h.b16 %v836
        %v1023 = vunpack.c.l.b16 %v837
        %v1024 = vunpack.c.h.b16 %v837
        %v1025 = vunpack.c.l.b16 %v838
        %v1026 = vunpack.c.h.b16 %v838
        %v1027 = vunpack.c.l.b16 %v839
        %v1028 = vunpack.c.h.b16 %v839
        %v1029 = vunpack.c.l.b16 %v840
        %v1030 = vunpack.c.h.b16 %v840
        %v1031 = vunpack.c.l.b16 %v841
        %v1032 = vunpack.c.h.b16 %v841
        %v1033 = vunpack.c.l.b16 %v842
        %v1034 = vunpack.c.h.b16 %v842
        %v1035 = vunpack.c.l.b16 %v843
        %v1036 = vunpack.c.h.b16 %v843
        %v1037 = vunpack.c.l.b16 %v844
        %v1038 = vunpack.c.h.b16 %v844
        %v1039 = vunpack.c.l.b16 %v845
        %v1040 = vunpack.c.h.b16 %v845
        %v1041 = vunpack.c.l.b16 %v846
        %v1042 = vunpack.c.h.b16 %v846
        %v1043 = vunpack.c.l.b16 %v847
        %v1044 = vunpack.c.h.b16 %v847
        %v1045 = vunpack.c.l.b16 %v848
        %v1046 = vunpack.c.h.b16 %v848
        %v1047 = vunpack.c.l.b16 %v849
        %v1048 = vunpack.c.h.b16 %v849
        %v1049 = vunpack.c.l.b16 %v850
        %v1050 = vunpack.c.h.b16 %v850
        %v1051 = vunpack.c.l.b16 %v851
        %v1052 = vunpack.c.h.b16 %v851
        %v1053 = vunpack.c.l.b16 %v852
        %v1054 = vunpack.c.h.b16 %v852
        %v1055 = vunpack.c.l.b16 %v853
        %v1056 = vunpack.c.h.b16 %v853
        %v1057 = vunpack.c.l.b16 %v854
        %v1058 = vunpack.c.h.b16 %v854
        %v1059 = vpack.c.b16 %v933, %v931
        %v1060 = vpack.c.b16 %v934, %v932
        %v1061 = vpack.c.b16 %v937, %v935
        %v1062 = vpack.c.b16 %v938, %v936
        %v1063 = vpack.c.b16 %v941, %v939
        %v1064 = vpack.c.b16 %v942, %v940
        %v1065 = vpack.c.b16 %v945, %v943
        %v1066 = vpack.c.b16 %v946, %v944
        %v1067 = vpack.c.b16 %v949, %v947
        %v1068 = vpack.c.b16 %v950, %v948
        %v1069 = vpack.c.b16 %v953, %v951
        %v1070 = vpack.c.b16 %v954, %v952
        %v1071 = vpack.c.b16 %v957, %v955
        %v1072 = vpack.c.b16 %v958, %v956
        %v1073 = vpack.c.b16 %v961, %v959
        %v1074 = vpack.c.b16 %v962, %v960
        %v1075 = vpack.c.b16 %v965, %v963
        %v1076 = vpack.c.b16 %v966, %v964
        %v1077 = vpack.c.b16 %v969, %v967
        %v1078 = vpack.c.b16 %v970, %v968
        %v1079 = vpack.c.b16 %v973, %v971
        %v1080 = vpack.c.b16 %v974, %v972
        %v1081 = vpack.c.b16 %v977, %v975
        %v1082 = vpack.c.b16 %v978, %v976
        %v1083 = vpack.c.b16 %v981, %v979
        %v1084 = vpack.c.b16 %v982, %v980
        %v1085 = vpack.c.b16 %v985, %v983
        %v1086 = vpack.c.b16 %v986, %v984
        %v1087 = vpack.c.b16 %v989, %v987
        %v1088 = vpack.c.b16 %v990, %v988
        %v1089 = vpack.c.b16 %v993, %v991
        %v1090 = vpack.c.b16 %v994, %v992
        %v1091 = vpack.c.b16 %v997, %v995
        %v1092 = vpack.c.b16 %v998, %v996
        %v1093 = vpack.c.b16 %v1001, %v999
        %v1094 = vpack.c.b16 %v1002, %v1000
        %v1095 = vpack.c.b16 %v1005, %v1003
        %v1096 = vpack.c.b16 %v1006, %v1004
        %v1097 = vpack.c.b16 %v1009, %v1007
        %v1098 = vpack.c.b16 %v1010, %v1008
        %v1099 = vpack.c.b16 %v1013, %v1011
        %v1100 = vpack.c.b16 %v1014, %v1012
        %v1101 = vpack.c.b16 %v1017, %v1015
        %v1102 = vpack.c.b16 %v1018, %v1016
        %v1103 = vpack.c.b16 %v1021, %v1019
        %v1104 = vpack.c.b16 %v1022, %v1020
        %v1105 = vpack.c.b16 %v1025, %v1023
        %v1106 = vpack.c.b16 %v1026, %v1024
        %v1107 = vpack.c.b16 %v1029, %v1027
        %v1108 = vpack.c.b16 %v1030, %v1028
        %v1109 = vpack.c.b16 %v1033, %v1031
        %v1110 = vpack.c.b16 %v1034, %v1032
        %v1111 = vpack.c.b16 %v1037, %v1035
        %v1112 = vpack.c.b16 %v1038, %v1036
        %v1113 = vpack.c.b16 %v1041, %v1039
        %v1114 = vpack.c.b16 %v1042, %v1040
        %v1115 = vpack.c.b16 %v1045, %v1043
        %v1116 = vpack.c.b16 %v1046, %v1044
        %v1117 = vpack.c.b16 %v1049, %v1047
        %v1118 = vpack.c.b16 %v1050, %v1048
        %v1119 = vpack.c.b16 %v1053, %v1051
        %v1120 = vpack.c.b16 %v1054, %v1052
        %v1121 = vpack.c.b16 %v1057, %v1055
        %v1122 = vpack.c.b16 %v1058, %v1056
        %1187 = vmatprep.subr.bf16.mxu0 %v1060
        %1188 = vmatpush1.bf16.msra.mxu0 %v1059
        %1189 = vmatprep.subr.bf16.mxu0 %v1062
        %1190 = vmatpush1.bf16.msra.mxu0 %v1061
        %1191 = vmatprep.subr.bf16.mxu0 %v1064
        %1192 = vmatpush1.bf16.msra.mxu0 %v1063
        %1193 = vmatprep.subr.bf16.mxu0 %v1066
        %1194 = vmatpush1.bf16.msra.mxu0 %v1065
        %1195 = vmatprep.subr.bf16.mxu0 %v1068
        %1196 = vmatpush1.bf16.msra.mxu0 %v1067
        %1197 = vmatprep.subr.bf16.mxu0 %v1070
        %1198 = vmatpush1.bf16.msra.mxu0 %v1069
        %1199 = vmatprep.subr.bf16.mxu0 %v1072
        %1200 = vmatpush1.bf16.msra.mxu0 %v1071
        %1201 = vmatprep.subr.bf16.mxu0 %v1074
        %1202 = vmatpush1.bf16.msra.mxu0 %v1073
        %1203 = vmatprep.subr.bf16.mxu0 %v1076
        %1204 = vmatpush1.bf16.msra.mxu0 %v1075
        %1205 = vmatprep.subr.bf16.mxu0 %v1078
        %1206 = vmatpush1.bf16.msra.mxu0 %v1077
        %1207 = vmatprep.subr.bf16.mxu0 %v1080
        %1208 = vmatpush1.bf16.msra.mxu0 %v1079
        %1209 = vmatprep.subr.bf16.mxu0 %v1082
        %1210 = vmatpush1.bf16.msra.mxu0 %v1081
        %1211 = vmatprep.subr.bf16.mxu0 %v1084
        %1212 = vmatpush1.bf16.msra.mxu0 %v1083
        %1213 = vmatprep.subr.bf16.mxu0 %v1086
        %1214 = vmatpush1.bf16.msra.mxu0 %v1085
        %1215 = vmatprep.subr.bf16.mxu0 %v1088
        %1216 = vmatpush1.bf16.msra.mxu0 %v1087
        %1217 = vmatprep.subr.bf16.mxu0 %v1090
        %1218 = vmatpush1.bf16.msra.mxu0 %v1089
        %1219 = vmatprep.mubr.bf16.mxu0 %v760
        %1220 = vmatmul.mubr.bf16.gmra.mrb[0].mxu0 %v759
        %v1221 = vpop.f32.mrb[0].mxu0
        %v1222 = vadd.f32 %v860, %v1221
        %v1223 = vpop.f32.mrb[0].mxu0
        %v1224 = vadd.f32 %v864, %v1223
        %v1225 = vpop.f32.mrb[0].mxu0
        %v1226 = vadd.f32 %v860, %v1225
        %v1227 = vpop.f32.mrb[0].mxu0
        %v1228 = vadd.f32 %v864, %v1227
        %1229 = vmatprep.mubr.bf16.mxu0 %v764
        %1230 = vmatmul.mubr.bf16.gmra.mrb[0].mxu0 %v763
        %v1231 = vpop.f32.mrb[0].mxu0
        %v1232 = vadd.f32 %v860, %v1231
        %v1233 = vpop.f32.mrb[0].mxu0
        %v1234 = vadd.f32 %v864, %v1233
        %v1235 = vpop.f32.mrb[0].mxu0
        %v1236 = vadd.f32 %v860, %v1235
        %v1237 = vpop.f32.mrb[0].mxu0
        %v1238 = vadd.f32 %v864, %v1237
        %1239 = vmatprep.mubr.bf16.mxu0 %v768
        %1240 = vmatmul.mubr.bf16.gmra.mrb[0].mxu0 %v767
        %v1241 = vpop.f32.mrb[0].mxu0
        %v1242 = vadd.f32 %v860, %v1241
        %v1243 = vpop.f32.mrb[0].mxu0
        %v1244 = vadd.f32 %v864, %v1243
        %v1245 = vpop.f32.mrb[0].mxu0
        %v1246 = vadd.f32 %v860, %v1245
        %v1247 = vpop.f32.mrb[0].mxu0
        %v1248 = vadd.f32 %v864, %v1247
        %1249 = vmatprep.mubr.bf16.mxu0 %v772
        %1250 = vmatmul.mubr.bf16.gmra.mrb[0].mxu0 %v771
        %v1251 = vpop.f32.mrb[0].mxu0
        %v1252 = vadd.f32 %v860, %v1251
        %v1253 = vpop.f32.mrb[0].mxu0
        %v1254 = vadd.f32 %v864, %v1253
        %v1255 = vpop.f32.mrb[0].mxu0
        %v1256 = vadd.f32 %v860, %v1255
        %v1257 = vpop.f32.mrb[0].mxu0
        %v1258 = vadd.f32 %v864, %v1257
        %1259 = vmatprep.mubr.bf16.mxu0 %v776
        %1260 = vmatmul.mubr.bf16.gmra.mrb[0].mxu0 %v775
        %v1261 = vpop.f32.mrb[0].mxu0
        %v1262 = vadd.f32 %v860, %v1261
        %v1263 = vpop.f32.mrb[0].mxu0
        %v1264 = vadd.f32 %v864, %v1263
        %v1265 = vpop.f32.mrb[0].mxu0
        %v1266 = vadd.f32 %v860, %v1265
        %v1267 = vpop.f32.mrb[0].mxu0
        %v1268 = vadd.f32 %v864, %v1267
        %1269 = vmatprep.mubr.bf16.mxu0 %v780
        %1270 = vmatmul.mubr.bf16.gmra.mrb[0].mxu0 %v779
        %v1271 = vpop.f32.mrb[0].mxu0
        %v1272 = vadd.f32 %v860, %v1271
        %v1273 = vpop.f32.mrb[0].mxu0
        %v1274 = vadd.f32 %v864, %v1273
        %v1275 = vpop.f32.mrb[0].mxu0
        %v1276 = vadd.f32 %v860, %v1275
        %v1277 = vpop.f32.mrb[0].mxu0
        %v1278 = vadd.f32 %v864, %v1277
        %1279 = vmatprep.mubr.bf16.mxu0 %v784
        %1280 = vmatmul.mubr.bf16.gmra.mrb[0].mxu0 %v783
        %v1281 = vpop.f32.mrb[0].mxu0
        %v1282 = vadd.f32 %v860, %v1281
        %v1283 = vpop.f32.mrb[0].mxu0
        %v1284 = vadd.f32 %v864, %v1283
        %v1285 = vpop.f32.mrb[0].mxu0
        %v1286 = vadd.f32 %v860, %v1285
        %v1287 = vpop.f32.mrb[0].mxu0
        %v1288 = vadd.f32 %v864, %v1287
        %1289 = vmatprep.mubr.bf16.mxu0 %v788
        %1290 = vmatmul.mubr.bf16.gmra.mrb[0].mxu0 %v787
        %v1291 = vpop.f32.mrb[0].mxu0
        %v1292 = vadd.f32 %v860, %v1291
        %v1293 = vpop.f32.mrb[0].mxu0
        %v1294 = vadd.f32 %v864, %v1293
        %v1295 = vpop.f32.mrb[0].mxu0
        %v1296 = vadd.f32 %v860, %v1295
        %v1297 = vpop.f32.mrb[0].mxu0
        %v1298 = vadd.f32 %v864, %v1297
        %1299 = vdwg.mxu0
        %1300 = vmatprep.subr.bf16.mxu0 %v1092
        %1301 = vmatpush1.bf16.msra.mxu0 %v1091
        %1302 = vmatprep.subr.bf16.mxu0 %v1094
        %1303 = vmatpush1.bf16.msra.mxu0 %v1093
        %1304 = vmatprep.subr.bf16.mxu0 %v1096
        %1305 = vmatpush1.bf16.msra.mxu0 %v1095
        %1306 = vmatprep.subr.bf16.mxu0 %v1098
        %1307 = vmatpush1.bf16.msra.mxu0 %v1097
        %1308 = vmatprep.subr.bf16.mxu0 %v1100
        %1309 = vmatpush1.bf16.msra.mxu0 %v1099
        %1310 = vmatprep.subr.bf16.mxu0 %v1102
        %1311 = vmatpush1.bf16.msra.mxu0 %v1101
        %1312 = vmatprep.subr.bf16.mxu0 %v1104
        %1313 = vmatpush1.bf16.msra.mxu0 %v1103
        %1314 = vmatprep.subr.bf16.mxu0 %v1106
        %1315 = vmatpush1.bf16.msra.mxu0 %v1105
        %1316 = vmatprep.subr.bf16.mxu0 %v1108
        %1317 = vmatpush1.bf16.msra.mxu0 %v1107
        %1318 = vmatprep.subr.bf16.mxu0 %v1110
        %1319 = vmatpush1.bf16.msra.mxu0 %v1109
        %1320 = vmatprep.subr.bf16.mxu0 %v1112
        %1321 = vmatpush1.bf16.msra.mxu0 %v1111
        %1322 = vmatprep.subr.bf16.mxu0 %v1114
        %1323 = vmatpush1.bf16.msra.mxu0 %v1113
        %1324 = vmatprep.subr.bf16.mxu0 %v1116
        %1325 = vmatpush1.bf16.msra.mxu0 %v1115
        %1326 = vmatprep.subr.bf16.mxu0 %v1118
        %1327 = vmatpush1.bf16.msra.mxu0 %v1117
        %1328 = vmatprep.subr.bf16.mxu0 %v1120
        %1329 = vmatpush1.bf16.msra.mxu0 %v1119
        %1330 = vmatprep.subr.bf16.mxu0 %v1122
        %1331 = vmatpush1.bf16.msra.mxu0 %v1121
        %1332 = vmatprep.mubr.bf16.mxu0 %v762
        %1333 = vmatmul.mubr.bf16.gmra.mrb[0].mxu0 %v761
        %v1334 = vpop.f32.mrb[0].mxu0
        %v1335 = vadd.f32 %v1222, %v1334
        %v1336 = vpop.f32.mrb[0].mxu0
        %v1337 = vadd.f32 %v1224, %v1336
        %v1338 = vpop.f32.mrb[0].mxu0
        %v1339 = vadd.f32 %v1226, %v1338
        %v1340 = vpop.f32.mrb[0].mxu0
        %v1341 = vadd.f32 %v1228, %v1340
        %1342 = vmatprep.mubr.bf16.mxu0 %v766
        %1343 = vmatmul.mubr.bf16.gmra.mrb[0].mxu0 %v765
        %v1344 = vpop.f32.mrb[0].mxu0
        %v1345 = vadd.f32 %v1232, %v1344
        %v1346 = vpop.f32.mrb[0].mxu0
        %v1347 = vadd.f32 %v1234, %v1346
        %v1348 = vpop.f32.mrb[0].mxu0
        %v1349 = vadd.f32 %v1236, %v1348
        %v1350 = vpop.f32.mrb[0].mxu0
        %v1351 = vadd.f32 %v1238, %v1350
        %1352 = vmatprep.mubr.bf16.mxu0 %v770
        %1353 = vmatmul.mubr.bf16.gmra.mrb[0].mxu0 %v769
        %v1354 = vpop.f32.mrb[0].mxu0
        %v1355 = vadd.f32 %v1242, %v1354
        %v1356 = vpop.f32.mrb[0].mxu0
        %v1357 = vadd.f32 %v1244, %v1356
        %v1358 = vpop.f32.mrb[0].mxu0
        %v1359 = vadd.f32 %v1246, %v1358
        %v1360 = vpop.f32.mrb[0].mxu0
        %v1361 = vadd.f32 %v1248, %v1360
        %1362 = vmatprep.mubr.bf16.mxu0 %v774
        %1363 = vmatmul.mubr.bf16.gmra.mrb[0].mxu0 %v773
        %v1364 = vpop.f32.mrb[0].mxu0
        %v1365 = vadd.f32 %v1252, %v1364
        %v1366 = vpop.f32.mrb[0].mxu0
        %v1367 = vadd.f32 %v1254, %v1366
        %v1368 = vpop.f32.mrb[0].mxu0
        %v1369 = vadd.f32 %v1256, %v1368
        %v1370 = vpop.f32.mrb[0].mxu0
        %v1371 = vadd.f32 %v1258, %v1370
        %1372 = vmatprep.mubr.bf16.mxu0 %v778
        %1373 = vmatmul.mubr.bf16.gmra.mrb[0].mxu0 %v777
        %v1374 = vpop.f32.mrb[0].mxu0
        %v1375 = vadd.f32 %v1262, %v1374
        %v1376 = vpop.f32.mrb[0].mxu0
        %v1377 = vadd.f32 %v1264, %v1376
        %v1378 = vpop.f32.mrb[0].mxu0
        %v1379 = vadd.f32 %v1266, %v1378
        %v1380 = vpop.f32.mrb[0].mxu0
        %v1381 = vadd.f32 %v1268, %v1380
        %1382 = vmatprep.mubr.bf16.mxu0 %v782
        %1383 = vmatmul.mubr.bf16.gmra.mrb[0].mxu0 %v781
        %v1384 = vpop.f32.mrb[0].mxu0
        %v1385 = vadd.f32 %v1272, %v1384
        %v1386 = vpop.f32.mrb[0].mxu0
        %v1387 = vadd.f32 %v1274, %v1386
        %v1388 = vpop.f32.mrb[0].mxu0
        %v1389 = vadd.f32 %v1276, %v1388
        %v1390 = vpop.f32.mrb[0].mxu0
        %v1391 = vadd.f32 %v1278, %v1390
        %1392 = vmatprep.mubr.bf16.mxu0 %v786
        %1393 = vmatmul.mubr.bf16.gmra.mrb[0].mxu0 %v785
        %v1394 = vpop.f32.mrb[0].mxu0
        %v1395 = vadd.f32 %v1282, %v1394
        %v1396 = vpop.f32.mrb[0].mxu0
        %v1397 = vadd.f32 %v1284, %v1396
        %v1398 = vpop.f32.mrb[0].mxu0
        %v1399 = vadd.f32 %v1286, %v1398
        %v1400 = vpop.f32.mrb[0].mxu0
        %v1401 = vadd.f32 %v1288, %v1400
        %1402 = vmatprep.mubr.bf16.mxu0 %v790
        %1403 = vmatmul.mubr.bf16.gmra.mrb[0].mxu0 %v789
        %v1404 = vpop.f32.mrb[0].mxu0
        %v1405 = vadd.f32 %v1292, %v1404
        %v1406 = vpop.f32.mrb[0].mxu0
        %v1407 = vadd.f32 %v1294, %v1406
        %v1408 = vpop.f32.mrb[0].mxu0
        %v1409 = vadd.f32 %v1296, %v1408
        %v1410 = vpop.f32.mrb[0].mxu0
        %v1411 = vadd.f32 %v1298, %v1410
        %1412 = vdwg.mxu0
        %v1413 = vmax.f32 %v1335, 0.0
        %v1414 = vmax.f32 %v1337, 0.0
        %v1415 = vmax.f32 %v1339, 0.0
        %v1416 = vmax.f32 %v1341, 0.0
        %v1417 = vmax.f32 %v1345, 0.0
        %v1418 = vmax.f32 %v1347, 0.0
        %v1419 = vmax.f32 %v1349, 0.0
        %v1420 = vmax.f32 %v1351, 0.0
        %v1421 = vmax.f32 %v1355, 0.0
        %v1422 = vmax.f32 %v1357, 0.0
        %v1423 = vmax.f32 %v1359, 0.0
        %v1424 = vmax.f32 %v1361, 0.0
        %v1425 = vmax.f32 %v1365, 0.0
        %v1426 = vmax.f32 %v1367, 0.0
        %v1427 = vmax.f32 %v1369, 0.0
        %v1428 = vmax.f32 %v1371, 0.0
        %v1429 = vmax.f32 %v1375, 0.0
        %v1430 = vmax.f32 %v1377, 0.0
        %v1431 = vmax.f32 %v1379, 0.0
        %v1432 = vmax.f32 %v1381, 0.0
        %v1433 = vmax.f32 %v1385, 0.0
        %v1434 = vmax.f32 %v1387, 0.0
        %v1435 = vmax.f32 %v1389, 0.0
        %v1436 = vmax.f32 %v1391, 0.0
        %v1437 = vmax.f32 %v1395, 0.0
        %v1438 = vmax.f32 %v1397, 0.0
        %v1439 = vmax.f32 %v1399, 0.0
        %v1440 = vmax.f32 %v1401, 0.0
        %v1441 = vmax.f32 %v1405, 0.0
        %v1442 = vmax.f32 %v1407, 0.0
        %v1443 = vmax.f32 %v1409, 0.0
        %v1444 = vmax.f32 %v1411, 0.0
        %v1445 = vpack.c.bf16 %v1415, %v1413
        %v1446 = vpack.c.bf16 %v1416, %v1414
        %v1447 = vpack.c.bf16 %v1419, %v1417
        %v1448 = vpack.c.bf16 %v1420, %v1418
        %v1449 = vpack.c.bf16 %v1423, %v1421
        %v1450 = vpack.c.bf16 %v1424, %v1422
        %v1451 = vpack.c.bf16 %v1427, %v1425
        %v1452 = vpack.c.bf16 %v1428, %v1426
        %v1453 = vpack.c.bf16 %v1431, %v1429
        %v1454 = vpack.c.bf16 %v1432, %v1430
        %v1455 = vpack.c.bf16 %v1435, %v1433
        %v1456 = vpack.c.bf16 %v1436, %v1434
        %v1457 = vpack.c.bf16 %v1439, %v1437
        %v1458 = vpack.c.bf16 %v1440, %v1438
        %v1459 = vpack.c.bf16 %v1443, %v1441
        %v1460 = vpack.c.bf16 %v1444, %v1442
        %v1461 = vld [vmem:[%s5] sm:$0xf]
        %v1462 = vld [vmem:[%s5 + $0x4] sm:$0xf]
        %v1463 = vld [vmem:[%s5 + $0x8] sm:$0xf]
        %v1464 = vld [vmem:[%s5 + $0xc] sm:$0xf]
        %v1465 = vld [vmem:[%s5 + $0x10] sm:$0xf]
        %v1466 = vld [vmem:[%s5 + $0x14] sm:$0xf]
        %v1467 = vld [vmem:[%s5 + $0x18] sm:$0xf]
        %v1468 = vld [vmem:[%s5 + $0x1c] sm:$0xf]
        %v1469 = vld [vmem:[%s5 + $0x20] sm:$0xf]
        %v1470 = vld [vmem:[%s5 + $0x24] sm:$0xf]
        %v1471 = vld [vmem:[%s5 + $0x28] sm:$0xf]
        %v1472 = vld [vmem:[%s5 + $0x2c] sm:$0xf]
        %v1473 = vld [vmem:[%s5 + $0x30] sm:$0xf]
        %v1474 = vld [vmem:[%s5 + $0x34] sm:$0xf]
        %v1475 = vld [vmem:[%s5 + $0x38] sm:$0xf]
        %v1476 = vld [vmem:[%s5 + $0x3c] sm:$0xf]
        %v1477 = vld [vmem:[%s5 + $0x40] sm:$0xf]
        %v1478 = vld [vmem:[%s5 + $0x44] sm:$0xf]
        %v1479 = vld [vmem:[%s5 + $0x48] sm:$0xf]
        %v1480 = vld [vmem:[%s5 + $0x4c] sm:$0xf]
        %v1481 = vld [vmem:[%s5 + $0x50] sm:$0xf]
        %v1482 = vld [vmem:[%s5 + $0x54] sm:$0xf]
        %v1483 = vld [vmem:[%s5 + $0x58] sm:$0xf]
        %v1484 = vld [vmem:[%s5 + $0x5c] sm:$0xf]
        %v1485 = vld [vmem:[%s5 + $0x60] sm:$0xf]
        %v1486 = vld [vmem:[%s5 + $0x64] sm:$0xf]
        %v1487 = vld [vmem:[%s5 + $0x68] sm:$0xf]
        %v1488 = vld [vmem:[%s5 + $0x6c] sm:$0xf]
        %v1489 = vld [vmem:[%s5 + $0x70] sm:$0xf]
        %v1490 = vld [vmem:[%s5 + $0x74] sm:$0xf]
        %v1491 = vld [vmem:[%s5 + $0x78] sm:$0xf]
        %v1492 = vld [vmem:[%s5 + $0x7c] sm:$0xf]
        %v1493 = vld [vmem:[%s6] sm:$0x1]
        %v1495 = vlaneseq
        %v1496 = vshrl.u32 %v1495, 7
        %v1497 = vsub.s32 0, %v1496
        %v1498 = vrot.slane %v1493, %v1497
        %v1532 = vunpack.c.l.b16 %v1461
        %v1533 = vunpack.c.l.b16 %v1462
        %v1534 = vunpack.c.l.b16 %v1463
        %v1535 = vunpack.c.l.b16 %v1464
        %v1536 = vunpack.c.l.b16 %v1465
        %v1537 = vunpack.c.l.b16 %v1466
        %v1538 = vunpack.c.l.b16 %v1467
        %v1539 = vunpack.c.l.b16 %v1468
        %v1540 = vunpack.c.l.b16 %v1469
        %v1541 = vunpack.c.l.b16 %v1470
        %v1542 = vunpack.c.l.b16 %v1471
        %v1543 = vunpack.c.l.b16 %v1472
        %v1544 = vunpack.c.l.b16 %v1473
        %v1545 = vunpack.c.l.b16 %v1474
        %v1546 = vunpack.c.l.b16 %v1475
        %v1547 = vunpack.c.l.b16 %v1476
        %v1548 = vunpack.c.l.b16 %v1477
        %v1549 = vunpack.c.l.b16 %v1478
        %v1550 = vunpack.c.l.b16 %v1479
        %v1551 = vunpack.c.l.b16 %v1480
        %v1552 = vunpack.c.l.b16 %v1481
        %v1553 = vunpack.c.l.b16 %v1482
        %v1554 = vunpack.c.l.b16 %v1483
        %v1555 = vunpack.c.l.b16 %v1484
        %v1556 = vunpack.c.l.b16 %v1485
        %v1557 = vunpack.c.l.b16 %v1486
        %v1558 = vunpack.c.l.b16 %v1487
        %v1559 = vunpack.c.l.b16 %v1488
        %v1560 = vunpack.c.l.b16 %v1489
        %v1561 = vunpack.c.l.b16 %v1490
        %v1562 = vunpack.c.l.b16 %v1491
        %v1563 = vunpack.c.l.b16 %v1492
        %v1564 = vpack.c.b16 %v1533, %v1532
        %v1565 = vpack.c.b16 %v1535, %v1534
        %v1566 = vpack.c.b16 %v1537, %v1536
        %v1567 = vpack.c.b16 %v1539, %v1538
        %v1568 = vpack.c.b16 %v1541, %v1540
        %v1569 = vpack.c.b16 %v1543, %v1542
        %v1570 = vpack.c.b16 %v1545, %v1544
        %v1571 = vpack.c.b16 %v1547, %v1546
        %v1572 = vpack.c.b16 %v1549, %v1548
        %v1573 = vpack.c.b16 %v1551, %v1550
        %v1574 = vpack.c.b16 %v1553, %v1552
        %v1575 = vpack.c.b16 %v1555, %v1554
        %v1576 = vpack.c.b16 %v1557, %v1556
        %v1577 = vpack.c.b16 %v1559, %v1558
        %v1578 = vpack.c.b16 %v1561, %v1560
        %v1579 = vpack.c.b16 %v1563, %v1562
        %1596 = vmatprep.subr.bf16.mxu0 0
        %1597 = vmatpush1.bf16.msra.mxu0 %v1564
        %1598 = vmatprep.subr.bf16.mxu0 0
        %1599 = vmatpush1.bf16.msra.mxu0 %v1565
        %1600 = vmatprep.subr.bf16.mxu0 0
        %1601 = vmatpush1.bf16.msra.mxu0 %v1566
        %1602 = vmatprep.subr.bf16.mxu0 0
        %1603 = vmatpush1.bf16.msra.mxu0 %v1567
        %1604 = vmatprep.subr.bf16.mxu0 0
        %1605 = vmatpush1.bf16.msra.mxu0 %v1568
        %1606 = vmatprep.subr.bf16.mxu0 0
        %1607 = vmatpush1.bf16.msra.mxu0 %v1569
        %1608 = vmatprep.subr.bf16.mxu0 0
        %1609 = vmatpush1.bf16.msra.mxu0 %v1570
        %1610 = vmatprep.subr.bf16.mxu0 0
        %1611 = vmatpush1.bf16.msra.mxu0 %v1571
        %1612 = vmatprep.subr.bf16.mxu0 0
        %1613 = vmatpush1.bf16.msra.mxu0 %v1572
        %1614 = vmatprep.subr.bf16.mxu0 0
        %1615 = vmatpush1.bf16.msra.mxu0 %v1573
        %1616 = vmatprep.subr.bf16.mxu0 0
        %1617 = vmatpush1.bf16.msra.mxu0 %v1574
        %1618 = vmatprep.subr.bf16.mxu0 0
        %1619 = vmatpush1.bf16.msra.mxu0 %v1575
        %1620 = vmatprep.subr.bf16.mxu0 0
        %1621 = vmatpush1.bf16.msra.mxu0 %v1576
        %1622 = vmatprep.subr.bf16.mxu0 0
        %1623 = vmatpush1.bf16.msra.mxu0 %v1577
        %1624 = vmatprep.subr.bf16.mxu0 0
        %1625 = vmatpush1.bf16.msra.mxu0 %v1578
        %1626 = vmatprep.subr.bf16.mxu0 0
        %1627 = vmatpush1.bf16.msra.mxu0 %v1579
        %1628 = vmatprep.mubr.bf16.mxu0 %v1446
        %1629 = vmatmul.mubr.bf16.gmra.mrb[0].mxu0 %v1445
        %v1630 = vpop.f32.mrb[0].mxu0
        %v1631 = vadd.f32 %v1498, %v1630
        %v1632 = vpop.f32.mrb[0].mxu0
        %v1633 = vpop.f32.mrb[0].mxu0
        %v1634 = vadd.f32 %v1498, %v1633
        %v1635 = vpop.f32.mrb[0].mxu0
        %1636 = vmatprep.mubr.bf16.mxu0 %v1448
        %1637 = vmatmul.mubr.bf16.gmra.mrb[0].mxu0 %v1447
        %v1638 = vpop.f32.mrb[0].mxu0
        %v1639 = vadd.f32 %v1498, %v1638
        %v1640 = vpop.f32.mrb[0].mxu0
        %v1641 = vpop.f32.mrb[0].mxu0
        %v1642 = vadd.f32 %v1498, %v1641
        %v1643 = vpop.f32.mrb[0].mxu0
        %1644 = vmatprep.mubr.bf16.mxu0 %v1450
        %1645 = vmatmul.mubr.bf16.gmra.mrb[0].mxu0 %v1449
        %v1646 = vpop.f32.mrb[0].mxu0
        %v1647 = vadd.f32 %v1498, %v1646
        %v1648 = vpop.f32.mrb[0].mxu0
        %v1649 = vpop.f32.mrb[0].mxu0
        %v1650 = vadd.f32 %v1498, %v1649
        %v1651 = vpop.f32.mrb[0].mxu0
        %1652 = vmatprep.mubr.bf16.mxu0 %v1452
        %1653 = vmatmul.mubr.bf16.gmra.mrb[0].mxu0 %v1451
        %v1654 = vpop.f32.mrb[0].mxu0
        %v1655 = vadd.f32 %v1498, %v1654
        %v1656 = vpop.f32.mrb[0].mxu0
        %v1657 = vpop.f32.mrb[0].mxu0
        %v1658 = vadd.f32 %v1498, %v1657
        %v1659 = vpop.f32.mrb[0].mxu0
        %1660 = vmatprep.mubr.bf16.mxu0 %v1454
        %1661 = vmatmul.mubr.bf16.gmra.mrb[0].mxu0 %v1453
        %v1662 = vpop.f32.mrb[0].mxu0
        %v1663 = vadd.f32 %v1498, %v1662
        %v1664 = vpop.f32.mrb[0].mxu0
        %v1665 = vpop.f32.mrb[0].mxu0
        %v1666 = vadd.f32 %v1498, %v1665
        %v1667 = vpop.f32.mrb[0].mxu0
        %1668 = vmatprep.mubr.bf16.mxu0 %v1456
        %1669 = vmatmul.mubr.bf16.gmra.mrb[0].mxu0 %v1455
        %v1670 = vpop.f32.mrb[0].mxu0
        %v1671 = vadd.f32 %v1498, %v1670
        %v1672 = vpop.f32.mrb[0].mxu0
        %v1673 = vpop.f32.mrb[0].mxu0
        %v1674 = vadd.f32 %v1498, %v1673
        %v1675 = vpop.f32.mrb[0].mxu0
        %1676 = vmatprep.mubr.bf16.mxu0 %v1458
        %1677 = vmatmul.mubr.bf16.gmra.mrb[0].mxu0 %v1457
        %v1678 = vpop.f32.mrb[0].mxu0
        %v1679 = vadd.f32 %v1498, %v1678
        %v1680 = vpop.f32.mrb[0].mxu0
        %v1681 = vpop.f32.mrb[0].mxu0
        %v1682 = vadd.f32 %v1498, %v1681
        %v1683 = vpop.f32.mrb[0].mxu0
        %1684 = vmatprep.mubr.bf16.mxu0 %v1460
        %1685 = vmatmul.mubr.bf16.gmra.mrb[0].mxu0 %v1459
        %v1686 = vpop.f32.mrb[0].mxu0
        %v1687 = vadd.f32 %v1498, %v1686
        %v1688 = vpop.f32.mrb[0].mxu0
        %v1689 = vpop.f32.mrb[0].mxu0
        %v1690 = vadd.f32 %v1498, %v1689
        %v1691 = vpop.f32.mrb[0].mxu0
        %1692 = vdwg.mxu0
        %v1693 = vmax.f32 %v1631, 0.0
        %v1694 = vmax.f32 %v1634, 0.0
        %v1695 = vmax.f32 %v1639, 0.0
        %v1696 = vmax.f32 %v1642, 0.0
        %v1697 = vmax.f32 %v1647, 0.0
        %v1698 = vmax.f32 %v1650, 0.0
        %v1699 = vmax.f32 %v1655, 0.0
        %v1700 = vmax.f32 %v1658, 0.0
        %v1701 = vmax.f32 %v1663, 0.0
        %v1702 = vmax.f32 %v1666, 0.0
        %v1703 = vmax.f32 %v1671, 0.0
        %v1704 = vmax.f32 %v1674, 0.0
        %v1705 = vmax.f32 %v1679, 0.0
        %v1706 = vmax.f32 %v1682, 0.0
        %v1707 = vmax.f32 %v1687, 0.0
        %v1708 = vmax.f32 %v1690, 0.0
        %v1709 = vld [vmem:[%s7] sm:$0x1]
        %v1710 = vld [vmem:[#allocation2] sm:$0x1]
        %1712 = vset.pattern.permute.xlu0 0
        %1713 = vperm.xlu0 %1712, %v1710
        %v1714 = vpop.permute.xlu0 %1713
        %v1716 = vlaneseq
        %v1717 = vshrl.u32 %v1716, 7
        %v1718 = vsub.s32 0, %v1717
        %v1719 = vrot.slane %v1714, %v1718
        %1720 = vmatprep.subr.mxu0 0.0
        %1721 = vmatpush1.xpose.msra.mxu0 %v1693
        %1722 = vmatprep.subr.mxu0 0.0
        %1723 = vmatpush1.xpose.msra.mxu0 %v1694
        %1724 = vmatprep.subr.mxu0 0.0
        %1725 = vmatpush1.xpose.msra.mxu0 %v1695
        %1726 = vmatprep.subr.mxu0 0.0
        %1727 = vmatpush1.xpose.msra.mxu0 %v1696
        %1728 = vmatprep.subr.mxu0 0.0
        %1729 = vmatpush1.xpose.msra.mxu0 %v1697
        %1730 = vmatprep.subr.mxu0 0.0
        %1731 = vmatpush1.xpose.msra.mxu0 %v1698
        %1732 = vmatprep.subr.mxu0 0.0
        %1733 = vmatpush1.xpose.msra.mxu0 %v1699
        %1734 = vmatprep.subr.mxu0 0.0
        %1735 = vmatpush1.xpose.msra.mxu0 %v1700
        %1736 = vmatprep.subr.mxu0 0.0
        %1737 = vmatpush1.xpose.msra.mxu0 %v1701
        %1738 = vmatprep.subr.mxu0 0.0
        %1739 = vmatpush1.xpose.msra.mxu0 %v1702
        %1740 = vmatprep.subr.mxu0 0.0
        %1741 = vmatpush1.xpose.msra.mxu0 %v1703
        %1742 = vmatprep.subr.mxu0 0.0
        %1743 = vmatpush1.xpose.msra.mxu0 %v1704
        %1744 = vmatprep.subr.mxu0 0.0
        %1745 = vmatpush1.xpose.msra.mxu0 %v1705
        %1746 = vmatprep.subr.mxu0 0.0
        %1747 = vmatpush1.xpose.msra.mxu0 %v1706
        %1748 = vmatprep.subr.mxu0 0.0
        %1749 = vmatpush1.xpose.msra.mxu0 %v1707
        %1750 = vmatprep.subr.mxu0 0.0
        %1751 = vmatpush1.xpose.msra.mxu0 %v1708
        %1752 = vmatprep.subr.mxu0 0.0
        %1753 = vmatpush1.xpose.msra.mxu0 0.0
        %1754 = vmatprep.subr.mxu0 0.0
        %1755 = vmatpush1.xpose.msra.mxu0 0.0
        %1756 = vmatprep.subr.mxu0 0.0
        %1757 = vmatpush1.xpose.msra.mxu0 0.0
        %1758 = vmatprep.subr.mxu0 0.0
        %1759 = vmatpush1.xpose.msra.mxu0 0.0
        %1760 = vmatprep.subr.mxu0 0.0
        %1761 = vmatpush1.xpose.msra.mxu0 0.0
        %1762 = vmatprep.subr.mxu0 0.0
        %1763 = vmatpush1.xpose.msra.mxu0 0.0
        %1764 = vmatprep.subr.mxu0 0.0
        %1765 = vmatpush1.xpose.msra.mxu0 0.0
        %1766 = vmatprep.subr.mxu0 0.0
        %1767 = vmatpush1.xpose.msra.mxu0 0.0
        %1768 = vmatprep.subr.mxu0 0.0
        %1769 = vmatpush1.xpose.msra.mxu0 0.0
        %1770 = vmatprep.subr.mxu0 0.0
        %1771 = vmatpush1.xpose.msra.mxu0 0.0
        %1772 = vmatprep.subr.mxu0 0.0
        %1773 = vmatpush1.xpose.msra.mxu0 0.0
        %1774 = vmatprep.subr.mxu0 0.0
        %1775 = vmatpush1.xpose.msra.mxu0 0.0
        %1776 = vmatprep.subr.mxu0 0.0
        %1777 = vmatpush1.xpose.msra.mxu0 0.0
        %1778 = vmatprep.subr.mxu0 0.0
        %1779 = vmatpush1.xpose.msra.mxu0 0.0
        %1780 = vmatprep.subr.mxu0 0.0
        %1781 = vmatpush1.xpose.msra.mxu0 0.0
        %1782 = vmatprep.subr.mxu0 0.0
        %1783 = vmatpush1.xpose.msra.mxu0 0.0
        %1784 = vmatprep.mubr.f32.mxu0 0.0
        %1785 = vmatmul.mubr.f32.gmra.mrb[0].mxu0 %v1709
        %v1786 = vpop.f32.mrb[0].mxu0
        %v1787 = vadd.f32 %v1719, %v1786
        %v1788 = vpop.f32.mrb[0].mxu0
        %1789 = vdwg.mxu0
        %1790 = vst [vmem:[%s342] sm:$0x1] %v1787
        %s1791 = sand.u32 %s228, 1
        %s1792 = scalar_lea.sflag [#allocation5], %s1791
        %s1793 = sand.u32 %s228, 1
        %s1794 = scalar_lea.vmem [#allocation6], %s1793
        // Predicated region
        $region61: #{tpu_custom_call.1} parent=55 // pred_check
          %p1795 = pneg %p238
        $region62: #{tpu_custom_call.1} parent=55 // pred_check_branch
          %1797 = sbr.rel (%p1795) target = $region64
        $region63: #{tpu_custom_call.1} parent=55 // pred_region
          %s1799 = ssub.s32 16, 16
          %1800 = vsyncadd %s1792, %s1799
          %s1801 = smul.addr %s26, 16
          %s1802 = scalar_lea.hbm %s9, %s1801
          %s1804 = sshll.u32 %s1794, 4
          %s1805 = int_to_ptr.vmem [resolvable:$true] %s1804
          %1807 = dma.vmem_to_hbm [thread:$0]  %s1805, 16, %s1802, %s1792
        $region64: #{tpu_custom_call.1} parent=55 // pred_fallthru
          _
      $region56: #{tpu_custom_call.1} parent=5 // pred_fallthru
        _
      %p1808 = scmp.le.s32.totalorder 2, %s21
      // Predicated region
      $region65: #{tpu_custom_call.1} parent=5 // pred_check
        %p1809 = pneg %p1808
      $region66: #{tpu_custom_call.1} parent=5 // pred_check_branch
        %1811 = sbr.rel (%p1809) target = $region68
      $region67: #{tpu_custom_call.1} parent=5 // pred_region
        %s1812 = ssub.s32 %s21, 2
        // Predicated region
        $region69: #{tpu_custom_call.1} parent=67 // pred_check
          %p1813 = pneg %p244
        $region70: #{tpu_custom_call.1} parent=67 // pred_check_branch
          %1815 = sbr.rel (%p1813) target = $region72
        $region71: #{tpu_custom_call.1} parent=67 // pred_region
          %s1816 = sand.u32 %s229, 1
          %s1817 = scalar_lea.sflag [#allocation5], %s1816
          %s1818 = sand.u32 %s229, 1
          %s1819 = scalar_lea.vmem [#allocation6], %s1818
          %1820 = dma.done %s1817, 16
        $region72: #{tpu_custom_call.1} parent=67 // pred_fallthru
          _
      $region68: #{tpu_custom_call.1} parent=5 // pred_fallthru
        _
    $region6: #{tpu_custom_call.1} parent=1 // loop_footer
      %s25 = sadd.s32 1, %s21
    $region7: #{tpu_custom_call.1} parent=1 // loop_footer_branch
      %20 = sbr.rel target = $region3
    $region8: #{tpu_custom_call.1} parent=1 // loop_exit
      _
    %1821 = vsyncpa [#allocation4], 1
    %s1822 = scalar_lea.sflag [#allocation4], 1
    %1823 = vsyncpa %s1822, 1
    %1824 = vsyncpa [#allocation5], 1
    %s1825 = scalar_lea.sflag [#allocation5], 1
    %1826 = vsyncpa %s1825, 1

</llo_original>
